<compile_context>
chip_gen: v5e
topology: v5e:2x2
jax: 0.10.0
libtpu: 0.0.40
codegen_flags: <defaults>
</compile_context>

<pallas_src>
import functools

import jax
import jax.numpy as jnp
from jax.experimental import pallas as pl
from jax.experimental.pallas import tpu as pltpu


def _round_up(x, m):
    return ((x + m - 1) // m) * m


def _sparse_attention_kernel(x_ref, zp_ref, wqkv_ref, bqkv_ref, wproj_ref,
                             bproj_ref, o_ref, xg_ref, acc_ref,
                             *, tb, np_tok, n_valid, c, hg, hd, groups):
    # x_ref:     (tb, np_tok, c)        bf16 batch block (token padded)
    # zp_ref:    (np_tok, 1)            f32 patch gate, VMEM resident
    # wqkv_ref:  (groups, c, 3*hg*hd)   bf16, node gate + qk scale folded in
    # bqkv_ref:  (groups, 1, 3*hg*hd)   f32
    # wproj_ref: (groups, hg*hd, c)     bf16, layer gate folded in
    # bproj_ref: (1, c)                 f32, layer gate folded in
    # o_ref:     (tb, np_tok, c)        output block (x dtype)
    # xg_ref:    (tb*np_tok, c)         bf16 scratch: patch-gated x (shared by groups)
    # acc_ref:   (tb*np_tok, c)         f32 scratch: proj accumulator over groups
    g = pl.program_id(1)
    rows = tb * np_tok
    ghd = hg * hd

    @pl.when(g == 0)
    def _init():
        xg = x_ref[...].astype(jnp.float32) * zp_ref[...].reshape(1, np_tok, 1)
        xg_ref[...] = xg.reshape(rows, c).astype(xg_ref.dtype)
        acc_ref[...] = jnp.zeros_like(acc_ref)

    xg = xg_ref[...]                                            # (rows, c) bf16

    # This head group's q|k|v in one matmul (gates/scale already folded in).
    qkv = (jnp.dot(xg, wqkv_ref[g], preferred_element_type=jnp.float32)
           + bqkv_ref[g])                                       # (rows, 3*ghd) f32
    qkv = qkv.astype(jnp.bfloat16)

    # Additive mask for padded key columns (static no-op when not padded).
    if np_tok != n_valid:
        key_ids = jax.lax.broadcasted_iota(jnp.int32, (1, 1, np_tok), 2)
        kmask = jnp.where(key_ids < n_valid, 0.0, -1e30).astype(jnp.float32)
    else:
        kmask = None

    o_heads = []
    for hh in range(hg):                                        # static unroll
        q = qkv[:, 0 * ghd + hh * hd:0 * ghd + (hh + 1) * hd].reshape(tb, np_tok, hd)
        k = qkv[:, 1 * ghd + hh * hd:1 * ghd + (hh + 1) * hd].reshape(tb, np_tok, hd)
        v = qkv[:, 2 * ghd + hh * hd:2 * ghd + (hh + 1) * hd].reshape(tb, np_tok, hd)
        s = jnp.einsum('bqd,bkd->bqk', q, k,
                       preferred_element_type=jnp.float32)      # (tb, Np, Np) f32
        if kmask is not None:
            s = s + kmask
        s = s - jnp.max(s, axis=-1, keepdims=True)              # stable softmax
        p = jnp.exp(s)
        p = p * pl.reciprocal(jnp.sum(p, axis=-1, keepdims=True), approx=True)
        o_h = jnp.einsum('bqk,bkd->bqd', p.astype(jnp.bfloat16), v,
                         preferred_element_type=jnp.float32)    # (tb, Np, hd) f32
        o_heads.append(o_h)

    o_cat = jnp.concatenate(o_heads, axis=-1) if hg > 1 else o_heads[0]
    o_cat = o_cat.reshape(rows, ghd).astype(jnp.bfloat16)

    # proj(concat_h o_h) == sum_g o_cat_g @ Wproj_rows_g  (K = hg*hd per pass)
    acc_ref[...] += jnp.dot(o_cat, wproj_ref[g],
                            preferred_element_type=jnp.float32)

    @pl.when(g == groups - 1)
    def _finish():
        out = acc_ref[...] + bproj_ref[...]
        o_ref[...] = out.reshape(tb, np_tok, c).astype(o_ref.dtype)


def _pick_head_group(num_heads, hd):
    """Largest divisor of H with HG*hd <= 256 (fills the MXU contraction)."""
    hg = 1
    for cand in range(1, num_heads + 1):
        if num_heads % cand == 0 and cand * hd <= 256:
            hg = cand
    return hg


def _vmem_estimate(tb, np_tok, c, ghd, out_bytes):
    rows = tb * np_tok
    est = 2 * rows * c * 2                    # x block, bf16, double-buffered
    est += 2 * rows * c * out_bytes           # out block, double-buffered
    est += rows * c * (2 + 4)                 # xg (bf16) + acc (f32) scratch
    est += rows * 3 * ghd * 6                 # qkv f32 result + bf16 copy
    est += 2 * tb * np_tok * np_tok * 4       # one head's scores / probs (f32)
    est += 8 * c * c                          # resident bf16 weights (qkv + proj)
    return est


def _pick_tb(batch, np_tok, c, ghd, out_bytes, budget):
    """Largest batch tile that fits the VMEM budget, targeting tb*Np <= ~2k rows
    and keeping >=2 steps on the parallel axis when the batch allows."""
    divisors = [d for d in range(1, batch + 1) if batch % d == 0]
    fits = [d for d in divisors
            if _vmem_estimate(d, np_tok, c, ghd, out_bytes) <= budget
            and (d == 1 or d * np_tok <= 2048)]
    if not fits:
        return 1
    pref = [d for d in fits if batch // d >= 2] or fits
    return max(pref)


def _prepare_params(params, *, num_heads, n_tokens, n_padded, dim, hg, scale,
                    patch_search, prune_node, prune_layer, prune_activation):
    """Fold gates/scale into the weights and reorganize them head-group-major."""
    H, C = num_heads, dim
    hd = C // H
    G = H // hg
    ghd = hg * hd

    # Patch gate (per token), applied to x inside the kernel.
    if patch_search:
        z_patch = jnp.tanh(params["patch_zeta"]).reshape(n_tokens, 1)
    else:
        z_patch = jnp.ones((n_tokens, 1), jnp.float32)
    z_patch = z_patch.astype(jnp.float32)
    if n_padded != n_tokens:
        z_patch = jnp.pad(z_patch, ((0, n_padded - n_tokens), (0, 0)))

    # Node gate per (head, dim); qk scale folded into the q columns.
    if prune_node:
        zn = params["zeta_node"].reshape(H, hd).astype(jnp.float32)
    else:
        zn = jnp.ones((H, hd), jnp.float32)
    zn = zn.reshape(G, hg, hd)
    gate = jnp.stack([zn * scale, zn, zn], axis=1).reshape(G, 1, 3 * ghd)

    # Layer gate, folded into the proj weight/bias.
    if prune_layer:
        zl = params["zeta_layer"].reshape(()).astype(jnp.float32)
        if prune_activation:
            zl = jax.nn.sigmoid(zl)
    else:
        zl = jnp.float32(1.0)

    # qkv Linear: weight (3C, C), row index = s*C + h*hd + d ; bias (3C,).
    # Kernel layout per group g: columns ordered [s, head-in-group, d].
    wqkv = params["w_qkv"].astype(jnp.float32).reshape(3, G, hg, hd, C)
    wqkv = jnp.transpose(wqkv, (1, 4, 0, 2, 3)).reshape(G, C, 3 * ghd)
    bqkv = params["b_qkv"].astype(jnp.float32).reshape(3, G, hg, hd)
    bqkv = jnp.transpose(bqkv, (1, 0, 2, 3)).reshape(G, 1, 3 * ghd)
    wqkv = (wqkv * gate).astype(jnp.bfloat16)
    bqkv = (bqkv * gate).astype(jnp.float32)

    # proj Linear: y = a @ Wp.T + bp ; Wp.T row index = h*hd + d.
    wproj = params["w_proj"].astype(jnp.float32).T.reshape(G, ghd, C)
    wproj = (wproj * zl).astype(jnp.bfloat16)
    bproj = params["b_proj"].astype(jnp.float32).reshape(1, C) * zl

    return z_patch, wqkv, bqkv, wproj, bproj


def sparse_attention(x, params, *, num_heads, patch_search=False,
                     prune_node=False, prune_layer=False, prune_activation=True,
                     qk_scale=None):
    B, N, C = x.shape
    H = num_heads
    assert C % H == 0, "dim must be divisible by num_heads"
    hd = C // H
    scale = float(qk_scale) if qk_scale is not None else hd ** -0.5

    hg = _pick_head_group(H, hd)
    G = H // hg
    ghd = hg * hd

    # Token padding: multiple of 8 for sublane-clean (rows, C) reshapes; for
    # large N (e.g. ViT's 197) pad to a multiple of 128 for full-width lanes.
    Np = _round_up(N, 8) if N <= 128 else _round_up(N, 128)

    z_patch, wqkv, bqkv, wproj, bproj = _prepare_params(
        params, num_heads=H, n_tokens=N, n_padded=Np, dim=C, hg=hg, scale=scale,
        patch_search=patch_search, prune_node=prune_node,
        prune_layer=prune_layer, prune_activation=prune_activation)

    # bf16 activations into the kernel (all matmul operands are bf16 anyway).
    x_in = x.astype(jnp.bfloat16)
    if Np != N:
        x_in = jnp.pad(x_in, ((0, 0), (0, Np - N), (0, 0)))

    out_dtype = x.dtype
    out_bytes = jnp.dtype(out_dtype).itemsize

    # Generation-aware VMEM budgeting (64 MiB on v7x, 128 MiB on v5e/v6e).
    try:
        phys_vmem = int(pltpu.get_tpu_info().vmem_capacity_bytes)
    except Exception:
        phys_vmem = 64 * 1024 * 1024
    vmem_limit = max(32 * 1024 * 1024, int(phys_vmem * 0.70))
    budget = int(phys_vmem * 0.40)

    tb = _pick_tb(B, Np, C, ghd, out_bytes, budget)

    kernel = functools.partial(_sparse_attention_kernel,
                               tb=tb, np_tok=Np, n_valid=N, c=C,
                               hg=hg, hd=hd, groups=G)

    # Whole-array VMEM residency for weights/gates: DMA'd once, single buffer.
    def resident():
        return pl.BlockSpec(memory_space=pltpu.MemorySpace.VMEM)

    out = pl.pallas_call(
        kernel,
        out_shape=jax.ShapeDtypeStruct((B, Np, C), out_dtype),
        grid_spec=pltpu.PrefetchScalarGridSpec(
            num_scalar_prefetch=0,
            grid=(B // tb, G),
            in_specs=[
                pl.BlockSpec((tb, Np, C), lambda b, g: (b, 0, 0)),  # x (bf16)
                resident(),   # patch gate  (Np, 1)
                resident(),   # Wqkv        (G, C, 3*ghd)
                resident(),   # bqkv        (G, 1, 3*ghd)
                resident(),   # Wproj rows  (G, ghd, C)
                resident(),   # bproj       (1, C)
            ],
            out_specs=pl.BlockSpec((tb, Np, C), lambda b, g: (b, 0, 0)),
            scratch_shapes=[
                pltpu.VMEM((tb * Np, C), jnp.bfloat16),   # patch-gated x
                pltpu.VMEM((tb * Np, C), jnp.float32),    # proj accumulator
            ]),
        compiler_params=pltpu.CompilerParams(
            dimension_semantics=("parallel", "arbitrary"),
            vmem_limit_bytes=vmem_limit),
    )(x_in, z_patch, wqkv, bqkv, wproj, bproj)

    if Np != N:
        out = out[:, :N, :]
    return out


def sparse_attention_ref(x, params, *, num_heads, patch_search, prune_node,
                         prune_layer, prune_activation, qk_scale=None):
    """Pure-JAX f32 reference mirroring the PyTorch forward line by line."""
    B, N, C = x.shape
    H = num_heads
    hd = C // H
    scale = float(qk_scale) if qk_scale is not None else hd ** -0.5
    if patch_search:
        x = x * jnp.tanh(params["patch_zeta"])
    qkv = x @ params["w_qkv"].T + params["b_qkv"]
    qkv = qkv.reshape(B, N, 3, H, hd).transpose(2, 0, 3, 1, 4)     # (3,B,H,N,hd)
    if prune_node:
        # zeta_node is (1,1,H,1,hd): broadcasts directly against (3,B,H,N,hd),
        # exactly as the torch `qkv *= z`.
        qkv = qkv * params["zeta_node"]
    q, k, v = qkv[0], qkv[1], qkv[2]
    attn = (q @ jnp.swapaxes(k, -2, -1)) * scale
    attn = jax.nn.softmax(attn, axis=-1)
    out = (attn @ v).transpose(0, 2, 1, 3).reshape(B, N, C)
    out = out @ params["w_proj"].T + params["b_proj"]
    if prune_layer and prune_activation:
        out = out * jax.nn.sigmoid(params["zeta_layer"])
    elif prune_layer:
        out = out * params["zeta_layer"]
    return out


if __name__ == "__main__":
    # Small shapes consistent with the module: dim=C, num_heads=H, num_patches=N.
    # N=12 (not a multiple of 8) deliberately exercises the padding + key-mask path.
    B, N, C, H = 2, 12, 64, 8
    hd = C // H

    key = jax.random.PRNGKey(0)
    k_x, k_wqkv, k_bqkv, k_wp, k_bp, k_zn, k_zp = jax.random.split(key, 7)

    x = jax.random.normal(k_x, (B, N, C), dtype=jnp.float32)

    params = {
        # nn.Linear(dim, 3*dim, bias=True) -> weight (3C, C), bias (3C,)
        "w_qkv": 0.05 * jax.random.normal(k_wqkv, (3 * C, C), dtype=jnp.float32),
        "b_qkv": 0.01 * jax.random.normal(k_bqkv, (3 * C,), dtype=jnp.float32),
        # nn.Linear(dim, dim) -> weight (C, C), bias (C,)
        "w_proj": 0.05 * jax.random.normal(k_wp, (C, C), dtype=jnp.float32),
        "b_proj": 0.01 * jax.random.normal(k_bp, (C,), dtype=jnp.float32),
        # zeta parameters (perturbed so the gates are actually exercised)
        "patch_zeta": 3.0 * jnp.ones((1, N, 1), jnp.float32)
                      + 0.5 * jax.random.normal(k_zp, (1, N, 1), dtype=jnp.float32),
        "zeta_node": jnp.ones((1, 1, H, 1, hd), jnp.float32)
                     + 0.1 * jax.random.normal(k_zn, (1, 1, H, 1, hd), dtype=jnp.float32),
        "zeta_layer": jnp.ones((1,), jnp.float32),
    }

    # Exercise the patch-search gate and the node gate (layer prune is mutually
    # exclusive with node prune in __init__, so it stays off here).
    cfg = dict(num_heads=H, patch_search=True, prune_node=True,
               prune_layer=False, prune_activation=True, qk_scale=None)

    out = sparse_attention(x, params, **cfg)
    out = jax.block_until_ready(out)

    ref = sparse_attention_ref(x, params, **cfg)
    # bf16 matmul operands + approx reciprocal in the softmax => looser tol
    # than pure-f32, still tight enough to catch any layout/gating bug.
    if not bool(jnp.allclose(out, ref, atol=2e-2, rtol=2e-2)):
        err = float(jnp.max(jnp.abs(out - ref)))
        raise AssertionError(f"Pallas kernel mismatch vs JAX reference, max|d|={err}")

    print("KERNEL_OK")
</pallas_src>

<mosaic_0001>
module attributes {stable_mosaic.version = 11 : i64} {
  func.func @_sparse_attention_kernel(%arg0: i32, %arg1: i32, %arg2: memref<1x16x64xbf16, #tpu.memory_space<vmem>>, %arg3: memref<16x1xf32, #tpu.memory_space<vmem>>, %arg4: memref<1x64x192xbf16, #tpu.memory_space<vmem>>, %arg5: memref<1x1x192xf32, #tpu.memory_space<vmem>>, %arg6: memref<1x64x64xbf16, #tpu.memory_space<vmem>>, %arg7: memref<1x64xf32, #tpu.memory_space<vmem>>, %arg8: memref<1x16x64xf32, #tpu.memory_space<vmem>>, %arg9: memref<16x64xbf16, #tpu.memory_space<vmem>>, %arg10: memref<16x64xf32, #tpu.memory_space<vmem>>) attributes {dimension_semantics = [#tpu.dimension_semantics<parallel>, #tpu.dimension_semantics<arbitrary>], iteration_bounds = array<i64: 2, 1>, scalar_prefetch = 0 : i64, scratch_operands = 2 : i64, tpu.core_type = #tpu.core_type<tc>, window_params = [{transform_indices = @transform_0, window_bounds = array<i64: 1, 16, 64>}, {pipeline_mode = #tpu.pipeline_mode<synchronous>, transform_indices = @transform_1, window_bounds = array<i64: 16, 1>}, {pipeline_mode = #tpu.pipeline_mode<synchronous>, transform_indices = @transform_2, window_bounds = array<i64: 1, 64, 192>}, {pipeline_mode = #tpu.pipeline_mode<synchronous>, transform_indices = @transform_3, window_bounds = array<i64: 1, 1, 192>}, {pipeline_mode = #tpu.pipeline_mode<synchronous>, transform_indices = @transform_4, window_bounds = array<i64: 1, 64, 64>}, {pipeline_mode = #tpu.pipeline_mode<synchronous>, transform_indices = @transform_5, window_bounds = array<i64: 1, 64>}, {transform_indices = @transform_6, window_bounds = array<i64: 1, 16, 64>}]} {
    %c0_i32 = arith.constant 0 : i32
    %0 = arith.cmpi eq, %arg1, %c0_i32 : i32
    %1 = arith.extui %0 : i1 to i32
    %c0_i32_0 = arith.constant 0 : i32
    %2 = arith.cmpi ne, %1, %c0_i32_0 : i32
    scf.if %2 {
      %c0_49 = arith.constant 0 : index
      %c0_50 = arith.constant 0 : index
      %c0_51 = arith.constant 0 : index
      %201 = vector.load %arg2[%c0_49, %c0_50, %c0_51] : memref<1x16x64xbf16, #tpu.memory_space<vmem>>, vector<1x16x64xbf16>
      %202 = arith.extf %201 : vector<1x16x64xbf16> to vector<1x16x64xf32>
      %c0_52 = arith.constant 0 : index
      %c0_53 = arith.constant 0 : index
      %203 = vector.load %arg3[%c0_52, %c0_53] : memref<16x1xf32, #tpu.memory_space<vmem>>, vector<16x1xf32>
      %204 = vector.shape_cast %203 : vector<16x1xf32> to vector<1x16x1xf32>
      %205 = vector.broadcast %204 : vector<1x16x1xf32> to vector<1x16x64xf32>
      %206 = arith.mulf %202, %205 : vector<1x16x64xf32>
      %207 = vector.shape_cast %206 : vector<1x16x64xf32> to vector<16x64xf32>
      %208 = arith.truncf %207 : vector<16x64xf32> to vector<16x64xbf16>
      %c0_54 = arith.constant 0 : index
      %c0_55 = arith.constant 0 : index
      %209 = vector.load %arg9[%c0_54, %c0_55] : memref<16x64xbf16, #tpu.memory_space<vmem>>, vector<16x64xbf16>
      tpu.vector_store %arg9[%c0_54, %c0_55], %208 {strides = array<i32>} : memref<16x64xbf16, #tpu.memory_space<vmem>>, vector<16x64xbf16>,
      %cst_56 = arith.constant 0.000000e+00 : f32
      %210 = vector.broadcast %cst_56 : f32 to vector<16x64xf32>
      %c0_57 = arith.constant 0 : index
      %c0_58 = arith.constant 0 : index
      %211 = vector.load %arg10[%c0_57, %c0_58] : memref<16x64xf32, #tpu.memory_space<vmem>>, vector<16x64xf32>
      tpu.vector_store %arg10[%c0_57, %c0_58], %210 {strides = array<i32>} : memref<16x64xf32, #tpu.memory_space<vmem>>, vector<16x64xf32>,
    } else {
    }
    %c0 = arith.constant 0 : index
    %c0_1 = arith.constant 0 : index
    %3 = vector.load %arg9[%c0, %c0_1] : memref<16x64xbf16, #tpu.memory_space<vmem>>, vector<16x64xbf16>
    %4 = arith.index_cast %arg1 : i32 to index
    %c0_2 = arith.constant 0 : index
    %c0_3 = arith.constant 0 : index
    %5 = vector.load %arg4[%4, %c0_2, %c0_3] : memref<1x64x192xbf16, #tpu.memory_space<vmem>>, vector<1x64x192xbf16>
    %6 = vector.shape_cast %5 : vector<1x64x192xbf16> to vector<64x192xbf16>
    %cst = arith.constant dense<0.000000e+00> : vector<16x192xf32>
    %7 = tpu.matmul %3, %6, %cst {dimension_numbers = #tpu.dot_dimension_numbers<[1], [0], [0], [1], [0, 0, 1, 1], [], []>} : vector<16x64xbf16>, vector<64x192xbf16>, vector<16x192xf32> -> vector<16x192xf32>
    %8 = arith.index_cast %arg1 : i32 to index
    %c0_4 = arith.constant 0 : index
    %c0_5 = arith.constant 0 : index
    %9 = vector.load %arg5[%8, %c0_4, %c0_5] : memref<1x1x192xf32, #tpu.memory_space<vmem>>, vector<1x1x192xf32>
    %10 = vector.shape_cast %9 : vector<1x1x192xf32> to vector<1x192xf32>
    %11 = vector.broadcast %10 : vector<1x192xf32> to vector<16x192xf32>
    %12 = arith.addf %7, %11 : vector<16x192xf32>
    %13 = arith.truncf %12 : vector<16x192xf32> to vector<16x192xbf16>
    %14 = tpu.iota {dimensions = array<i32: 2>} : vector<1x1x16xi32>
    %c12_i32 = arith.constant 12 : i32
    %15 = vector.broadcast %c12_i32 : i32 to vector<1x1x16xi32>
    %16 = arith.cmpi slt, %14, %15 : vector<1x1x16xi32>
    %cst_6 = arith.constant 0.000000e+00 : f32
    %cst_7 = arith.constant -1.000000e+30 : f32
    %17 = vector.broadcast %cst_6 : f32 to vector<1x1x16xf32>
    %18 = vector.broadcast %cst_7 : f32 to vector<1x1x16xf32>
    %19 = arith.select %16, %17, %18 : vector<1x1x16xi1>, vector<1x1x16xf32>
    %20 = vector.extract_strided_slice %13 {offsets = [0, 0], sizes = [16, 8], strides = [1, 1]} : vector<16x192xbf16> to vector<16x8xbf16>
    %21 = vector.shape_cast %20 : vector<16x8xbf16> to vector<1x16x8xbf16>
    %22 = vector.extract_strided_slice %13 {offsets = [0, 64], sizes = [16, 8], strides = [1, 1]} : vector<16x192xbf16> to vector<16x8xbf16>
    %23 = vector.shape_cast %22 : vector<16x8xbf16> to vector<1x16x8xbf16>
    %24 = vector.extract_strided_slice %13 {offsets = [0, 128], sizes = [16, 8], strides = [1, 1]} : vector<16x192xbf16> to vector<16x8xbf16>
    %25 = vector.shape_cast %24 : vector<16x8xbf16> to vector<1x16x8xbf16>
    "tpu.trace_start"() <{level = 10 : i32, message = "bqd,bkd->bqk"}> : () -> ()
    %cst_8 = arith.constant dense<0.000000e+00> : vector<1x16x16xf32>
    %26 = tpu.matmul %21, %23, %cst_8 {dimension_numbers = #tpu.dot_dimension_numbers<[2], [2], [1], [1], [0, 0, 0, 1, 1, 1], [0], [0]>} : vector<1x16x8xbf16>, vector<1x16x8xbf16>, vector<1x16x16xf32> -> vector<1x16x16xf32>
    "tpu.trace_stop"() : () -> ()
    %27 = vector.broadcast %19 : vector<1x1x16xf32> to vector<1x16x16xf32>
    %28 = arith.addf %26, %27 : vector<1x16x16xf32>
    %cst_9 = arith.constant dense<0xFF800000> : vector<1x16xf32>
    %29 = vector.multi_reduction <maximumf>, %28, %cst_9 [2] : vector<1x16x16xf32> to vector<1x16xf32>
    %30 = vector.shape_cast %29 : vector<1x16xf32> to vector<1x16x1xf32>
    %31 = vector.broadcast %30 : vector<1x16x1xf32> to vector<1x16x16xf32>
    %32 = arith.subf %28, %31 : vector<1x16x16xf32>
    %33 = math.exp %32 : vector<1x16x16xf32>
    %cst_10 = arith.constant dense<0.000000e+00> : vector<1x16xf32>
    %34 = vector.multi_reduction <add>, %33, %cst_10 [2] : vector<1x16x16xf32> to vector<1x16xf32>
    %35 = vector.shape_cast %34 : vector<1x16xf32> to vector<1x16x1xf32>
    %36 = tpu.reciprocal %35 {approx = true} : vector<1x16x1xf32> -> vector<1x16x1xf32>
    %37 = vector.broadcast %36 : vector<1x16x1xf32> to vector<1x16x16xf32>
    %38 = arith.mulf %33, %37 : vector<1x16x16xf32>
    %39 = arith.truncf %38 : vector<1x16x16xf32> to vector<1x16x16xbf16>
    "tpu.trace_start"() <{level = 10 : i32, message = "bqk,bkd->bqd"}> : () -> ()
    %cst_11 = arith.constant dense<0.000000e+00> : vector<1x16x8xf32>
    %40 = tpu.matmul %39, %25, %cst_11 {dimension_numbers = #tpu.dot_dimension_numbers<[2], [1], [1], [2], [0, 0, 0, 1, 1, 2], [0], [0]>} : vector<1x16x16xbf16>, vector<1x16x8xbf16>, vector<1x16x8xf32> -> vector<1x16x8xf32>
    "tpu.trace_stop"() : () -> ()
    %41 = vector.extract_strided_slice %13 {offsets = [0, 8], sizes = [16, 8], strides = [1, 1]} : vector<16x192xbf16> to vector<16x8xbf16>
    %42 = vector.shape_cast %41 : vector<16x8xbf16> to vector<1x16x8xbf16>
    %43 = vector.extract_strided_slice %13 {offsets = [0, 72], sizes = [16, 8], strides = [1, 1]} : vector<16x192xbf16> to vector<16x8xbf16>
    %44 = vector.shape_cast %43 : vector<16x8xbf16> to vector<1x16x8xbf16>
    %45 = vector.extract_strided_slice %13 {offsets = [0, 136], sizes = [16, 8], strides = [1, 1]} : vector<16x192xbf16> to vector<16x8xbf16>
    %46 = vector.shape_cast %45 : vector<16x8xbf16> to vector<1x16x8xbf16>
    "tpu.trace_start"() <{level = 10 : i32, message = "bqd,bkd->bqk"}> : () -> ()
    %cst_12 = arith.constant dense<0.000000e+00> : vector<1x16x16xf32>
    %47 = tpu.matmul %42, %44, %cst_12 {dimension_numbers = #tpu.dot_dimension_numbers<[2], [2], [1], [1], [0, 0, 0, 1, 1, 1], [0], [0]>} : vector<1x16x8xbf16>, vector<1x16x8xbf16>, vector<1x16x16xf32> -> vector<1x16x16xf32>
    "tpu.trace_stop"() : () -> ()
    %48 = vector.broadcast %19 : vector<1x1x16xf32> to vector<1x16x16xf32>
    %49 = arith.addf %47, %48 : vector<1x16x16xf32>
    %cst_13 = arith.constant dense<0xFF800000> : vector<1x16xf32>
    %50 = vector.multi_reduction <maximumf>, %49, %cst_13 [2] : vector<1x16x16xf32> to vector<1x16xf32>
    %51 = vector.shape_cast %50 : vector<1x16xf32> to vector<1x16x1xf32>
    %52 = vector.broadcast %51 : vector<1x16x1xf32> to vector<1x16x16xf32>
    %53 = arith.subf %49, %52 : vector<1x16x16xf32>
    %54 = math.exp %53 : vector<1x16x16xf32>
    %cst_14 = arith.constant dense<0.000000e+00> : vector<1x16xf32>
    %55 = vector.multi_reduction <add>, %54, %cst_14 [2] : vector<1x16x16xf32> to vector<1x16xf32>
    %56 = vector.shape_cast %55 : vector<1x16xf32> to vector<1x16x1xf32>
    %57 = tpu.reciprocal %56 {approx = true} : vector<1x16x1xf32> -> vector<1x16x1xf32>
    %58 = vector.broadcast %57 : vector<1x16x1xf32> to vector<1x16x16xf32>
    %59 = arith.mulf %54, %58 : vector<1x16x16xf32>
    %60 = arith.truncf %59 : vector<1x16x16xf32> to vector<1x16x16xbf16>
    "tpu.trace_start"() <{level = 10 : i32, message = "bqk,bkd->bqd"}> : () -> ()
    %cst_15 = arith.constant dense<0.000000e+00> : vector<1x16x8xf32>
    %61 = tpu.matmul %60, %46, %cst_15 {dimension_numbers = #tpu.dot_dimension_numbers<[2], [1], [1], [2], [0, 0, 0, 1, 1, 2], [0], [0]>} : vector<1x16x16xbf16>, vector<1x16x8xbf16>, vector<1x16x8xf32> -> vector<1x16x8xf32>
    "tpu.trace_stop"() : () -> ()
    %62 = vector.extract_strided_slice %13 {offsets = [0, 16], sizes = [16, 8], strides = [1, 1]} : vector<16x192xbf16> to vector<16x8xbf16>
    %63 = vector.shape_cast %62 : vector<16x8xbf16> to vector<1x16x8xbf16>
    %64 = vector.extract_strided_slice %13 {offsets = [0, 80], sizes = [16, 8], strides = [1, 1]} : vector<16x192xbf16> to vector<16x8xbf16>
    %65 = vector.shape_cast %64 : vector<16x8xbf16> to vector<1x16x8xbf16>
    %66 = vector.extract_strided_slice %13 {offsets = [0, 144], sizes = [16, 8], strides = [1, 1]} : vector<16x192xbf16> to vector<16x8xbf16>
    %67 = vector.shape_cast %66 : vector<16x8xbf16> to vector<1x16x8xbf16>
    "tpu.trace_start"() <{level = 10 : i32, message = "bqd,bkd->bqk"}> : () -> ()
    %cst_16 = arith.constant dense<0.000000e+00> : vector<1x16x16xf32>
    %68 = tpu.matmul %63, %65, %cst_16 {dimension_numbers = #tpu.dot_dimension_numbers<[2], [2], [1], [1], [0, 0, 0, 1, 1, 1], [0], [0]>} : vector<1x16x8xbf16>, vector<1x16x8xbf16>, vector<1x16x16xf32> -> vector<1x16x16xf32>
    "tpu.trace_stop"() : () -> ()
    %69 = vector.broadcast %19 : vector<1x1x16xf32> to vector<1x16x16xf32>
    %70 = arith.addf %68, %69 : vector<1x16x16xf32>
    %cst_17 = arith.constant dense<0xFF800000> : vector<1x16xf32>
    %71 = vector.multi_reduction <maximumf>, %70, %cst_17 [2] : vector<1x16x16xf32> to vector<1x16xf32>
    %72 = vector.shape_cast %71 : vector<1x16xf32> to vector<1x16x1xf32>
    %73 = vector.broadcast %72 : vector<1x16x1xf32> to vector<1x16x16xf32>
    %74 = arith.subf %70, %73 : vector<1x16x16xf32>
    %75 = math.exp %74 : vector<1x16x16xf32>
    %cst_18 = arith.constant dense<0.000000e+00> : vector<1x16xf32>
    %76 = vector.multi_reduction <add>, %75, %cst_18 [2] : vector<1x16x16xf32> to vector<1x16xf32>
    %77 = vector.shape_cast %76 : vector<1x16xf32> to vector<1x16x1xf32>
    %78 = tpu.reciprocal %77 {approx = true} : vector<1x16x1xf32> -> vector<1x16x1xf32>
    %79 = vector.broadcast %78 : vector<1x16x1xf32> to vector<1x16x16xf32>
    %80 = arith.mulf %75, %79 : vector<1x16x16xf32>
    %81 = arith.truncf %80 : vector<1x16x16xf32> to vector<1x16x16xbf16>
    "tpu.trace_start"() <{level = 10 : i32, message = "bqk,bkd->bqd"}> : () -> ()
    %cst_19 = arith.constant dense<0.000000e+00> : vector<1x16x8xf32>
    %82 = tpu.matmul %81, %67, %cst_19 {dimension_numbers = #tpu.dot_dimension_numbers<[2], [1], [1], [2], [0, 0, 0, 1, 1, 2], [0], [0]>} : vector<1x16x16xbf16>, vector<1x16x8xbf16>, vector<1x16x8xf32> -> vector<1x16x8xf32>
    "tpu.trace_stop"() : () -> ()
    %83 = vector.extract_strided_slice %13 {offsets = [0, 24], sizes = [16, 8], strides = [1, 1]} : vector<16x192xbf16> to vector<16x8xbf16>
    %84 = vector.shape_cast %83 : vector<16x8xbf16> to vector<1x16x8xbf16>
    %85 = vector.extract_strided_slice %13 {offsets = [0, 88], sizes = [16, 8], strides = [1, 1]} : vector<16x192xbf16> to vector<16x8xbf16>
    %86 = vector.shape_cast %85 : vector<16x8xbf16> to vector<1x16x8xbf16>
    %87 = vector.extract_strided_slice %13 {offsets = [0, 152], sizes = [16, 8], strides = [1, 1]} : vector<16x192xbf16> to vector<16x8xbf16>
    %88 = vector.shape_cast %87 : vector<16x8xbf16> to vector<1x16x8xbf16>
    "tpu.trace_start"() <{level = 10 : i32, message = "bqd,bkd->bqk"}> : () -> ()
    %cst_20 = arith.constant dense<0.000000e+00> : vector<1x16x16xf32>
    %89 = tpu.matmul %84, %86, %cst_20 {dimension_numbers = #tpu.dot_dimension_numbers<[2], [2], [1], [1], [0, 0, 0, 1, 1, 1], [0], [0]>} : vector<1x16x8xbf16>, vector<1x16x8xbf16>, vector<1x16x16xf32> -> vector<1x16x16xf32>
    "tpu.trace_stop"() : () -> ()
    %90 = vector.broadcast %19 : vector<1x1x16xf32> to vector<1x16x16xf32>
    %91 = arith.addf %89, %90 : vector<1x16x16xf32>
    %cst_21 = arith.constant dense<0xFF800000> : vector<1x16xf32>
    %92 = vector.multi_reduction <maximumf>, %91, %cst_21 [2] : vector<1x16x16xf32> to vector<1x16xf32>
    %93 = vector.shape_cast %92 : vector<1x16xf32> to vector<1x16x1xf32>
    %94 = vector.broadcast %93 : vector<1x16x1xf32> to vector<1x16x16xf32>
    %95 = arith.subf %91, %94 : vector<1x16x16xf32>
    %96 = math.exp %95 : vector<1x16x16xf32>
    %cst_22 = arith.constant dense<0.000000e+00> : vector<1x16xf32>
    %97 = vector.multi_reduction <add>, %96, %cst_22 [2] : vector<1x16x16xf32> to vector<1x16xf32>
    %98 = vector.shape_cast %97 : vector<1x16xf32> to vector<1x16x1xf32>
    %99 = tpu.reciprocal %98 {approx = true} : vector<1x16x1xf32> -> vector<1x16x1xf32>
    %100 = vector.broadcast %99 : vector<1x16x1xf32> to vector<1x16x16xf32>
    %101 = arith.mulf %96, %100 : vector<1x16x16xf32>
    %102 = arith.truncf %101 : vector<1x16x16xf32> to vector<1x16x16xbf16>
    "tpu.trace_start"() <{level = 10 : i32, message = "bqk,bkd->bqd"}> : () -> ()
    %cst_23 = arith.constant dense<0.000000e+00> : vector<1x16x8xf32>
    %103 = tpu.matmul %102, %88, %cst_23 {dimension_numbers = #tpu.dot_dimension_numbers<[2], [1], [1], [2], [0, 0, 0, 1, 1, 2], [0], [0]>} : vector<1x16x16xbf16>, vector<1x16x8xbf16>, vector<1x16x8xf32> -> vector<1x16x8xf32>
    "tpu.trace_stop"() : () -> ()
    %104 = vector.extract_strided_slice %13 {offsets = [0, 32], sizes = [16, 8], strides = [1, 1]} : vector<16x192xbf16> to vector<16x8xbf16>
    %105 = vector.shape_cast %104 : vector<16x8xbf16> to vector<1x16x8xbf16>
    %106 = vector.extract_strided_slice %13 {offsets = [0, 96], sizes = [16, 8], strides = [1, 1]} : vector<16x192xbf16> to vector<16x8xbf16>
    %107 = vector.shape_cast %106 : vector<16x8xbf16> to vector<1x16x8xbf16>
    %108 = vector.extract_strided_slice %13 {offsets = [0, 160], sizes = [16, 8], strides = [1, 1]} : vector<16x192xbf16> to vector<16x8xbf16>
    %109 = vector.shape_cast %108 : vector<16x8xbf16> to vector<1x16x8xbf16>
    "tpu.trace_start"() <{level = 10 : i32, message = "bqd,bkd->bqk"}> : () -> ()
    %cst_24 = arith.constant dense<0.000000e+00> : vector<1x16x16xf32>
    %110 = tpu.matmul %105, %107, %cst_24 {dimension_numbers = #tpu.dot_dimension_numbers<[2], [2], [1], [1], [0, 0, 0, 1, 1, 1], [0], [0]>} : vector<1x16x8xbf16>, vector<1x16x8xbf16>, vector<1x16x16xf32> -> vector<1x16x16xf32>
    "tpu.trace_stop"() : () -> ()
    %111 = vector.broadcast %19 : vector<1x1x16xf32> to vector<1x16x16xf32>
    %112 = arith.addf %110, %111 : vector<1x16x16xf32>
    %cst_25 = arith.constant dense<0xFF800000> : vector<1x16xf32>
    %113 = vector.multi_reduction <maximumf>, %112, %cst_25 [2] : vector<1x16x16xf32> to vector<1x16xf32>
    %114 = vector.shape_cast %113 : vector<1x16xf32> to vector<1x16x1xf32>
    %115 = vector.broadcast %114 : vector<1x16x1xf32> to vector<1x16x16xf32>
    %116 = arith.subf %112, %115 : vector<1x16x16xf32>
    %117 = math.exp %116 : vector<1x16x16xf32>
    %cst_26 = arith.constant dense<0.000000e+00> : vector<1x16xf32>
    %118 = vector.multi_reduction <add>, %117, %cst_26 [2] : vector<1x16x16xf32> to vector<1x16xf32>
    %119 = vector.shape_cast %118 : vector<1x16xf32> to vector<1x16x1xf32>
    %120 = tpu.reciprocal %119 {approx = true} : vector<1x16x1xf32> -> vector<1x16x1xf32>
    %121 = vector.broadcast %120 : vector<1x16x1xf32> to vector<1x16x16xf32>
    %122 = arith.mulf %117, %121 : vector<1x16x16xf32>
    %123 = arith.truncf %122 : vector<1x16x16xf32> to vector<1x16x16xbf16>
    "tpu.trace_start"() <{level = 10 : i32, message = "bqk,bkd->bqd"}> : () -> ()
    %cst_27 = arith.constant dense<0.000000e+00> : vector<1x16x8xf32>
    %124 = tpu.matmul %123, %109, %cst_27 {dimension_numbers = #tpu.dot_dimension_numbers<[2], [1], [1], [2], [0, 0, 0, 1, 1, 2], [0], [0]>} : vector<1x16x16xbf16>, vector<1x16x8xbf16>, vector<1x16x8xf32> -> vector<1x16x8xf32>
    "tpu.trace_stop"() : () -> ()
    %125 = vector.extract_strided_slice %13 {offsets = [0, 40], sizes = [16, 8], strides = [1, 1]} : vector<16x192xbf16> to vector<16x8xbf16>
    %126 = vector.shape_cast %125 : vector<16x8xbf16> to vector<1x16x8xbf16>
    %127 = vector.extract_strided_slice %13 {offsets = [0, 104], sizes = [16, 8], strides = [1, 1]} : vector<16x192xbf16> to vector<16x8xbf16>
    %128 = vector.shape_cast %127 : vector<16x8xbf16> to vector<1x16x8xbf16>
    %129 = vector.extract_strided_slice %13 {offsets = [0, 168], sizes = [16, 8], strides = [1, 1]} : vector<16x192xbf16> to vector<16x8xbf16>
    %130 = vector.shape_cast %129 : vector<16x8xbf16> to vector<1x16x8xbf16>
    "tpu.trace_start"() <{level = 10 : i32, message = "bqd,bkd->bqk"}> : () -> ()
    %cst_28 = arith.constant dense<0.000000e+00> : vector<1x16x16xf32>
    %131 = tpu.matmul %126, %128, %cst_28 {dimension_numbers = #tpu.dot_dimension_numbers<[2], [2], [1], [1], [0, 0, 0, 1, 1, 1], [0], [0]>} : vector<1x16x8xbf16>, vector<1x16x8xbf16>, vector<1x16x16xf32> -> vector<1x16x16xf32>
    "tpu.trace_stop"() : () -> ()
    %132 = vector.broadcast %19 : vector<1x1x16xf32> to vector<1x16x16xf32>
    %133 = arith.addf %131, %132 : vector<1x16x16xf32>
    %cst_29 = arith.constant dense<0xFF800000> : vector<1x16xf32>
    %134 = vector.multi_reduction <maximumf>, %133, %cst_29 [2] : vector<1x16x16xf32> to vector<1x16xf32>
    %135 = vector.shape_cast %134 : vector<1x16xf32> to vector<1x16x1xf32>
    %136 = vector.broadcast %135 : vector<1x16x1xf32> to vector<1x16x16xf32>
    %137 = arith.subf %133, %136 : vector<1x16x16xf32>
    %138 = math.exp %137 : vector<1x16x16xf32>
    %cst_30 = arith.constant dense<0.000000e+00> : vector<1x16xf32>
    %139 = vector.multi_reduction <add>, %138, %cst_30 [2] : vector<1x16x16xf32> to vector<1x16xf32>
    %140 = vector.shape_cast %139 : vector<1x16xf32> to vector<1x16x1xf32>
    %141 = tpu.reciprocal %140 {approx = true} : vector<1x16x1xf32> -> vector<1x16x1xf32>
    %142 = vector.broadcast %141 : vector<1x16x1xf32> to vector<1x16x16xf32>
    %143 = arith.mulf %138, %142 : vector<1x16x16xf32>
    %144 = arith.truncf %143 : vector<1x16x16xf32> to vector<1x16x16xbf16>
    "tpu.trace_start"() <{level = 10 : i32, message = "bqk,bkd->bqd"}> : () -> ()
    %cst_31 = arith.constant dense<0.000000e+00> : vector<1x16x8xf32>
    %145 = tpu.matmul %144, %130, %cst_31 {dimension_numbers = #tpu.dot_dimension_numbers<[2], [1], [1], [2], [0, 0, 0, 1, 1, 2], [0], [0]>} : vector<1x16x16xbf16>, vector<1x16x8xbf16>, vector<1x16x8xf32> -> vector<1x16x8xf32>
    "tpu.trace_stop"() : () -> ()
    %146 = vector.extract_strided_slice %13 {offsets = [0, 48], sizes = [16, 8], strides = [1, 1]} : vector<16x192xbf16> to vector<16x8xbf16>
    %147 = vector.shape_cast %146 : vector<16x8xbf16> to vector<1x16x8xbf16>
    %148 = vector.extract_strided_slice %13 {offsets = [0, 112], sizes = [16, 8], strides = [1, 1]} : vector<16x192xbf16> to vector<16x8xbf16>
    %149 = vector.shape_cast %148 : vector<16x8xbf16> to vector<1x16x8xbf16>
    %150 = vector.extract_strided_slice %13 {offsets = [0, 176], sizes = [16, 8], strides = [1, 1]} : vector<16x192xbf16> to vector<16x8xbf16>
    %151 = vector.shape_cast %150 : vector<16x8xbf16> to vector<1x16x8xbf16>
    "tpu.trace_start"() <{level = 10 : i32, message = "bqd,bkd->bqk"}> : () -> ()
    %cst_32 = arith.constant dense<0.000000e+00> : vector<1x16x16xf32>
    %152 = tpu.matmul %147, %149, %cst_32 {dimension_numbers = #tpu.dot_dimension_numbers<[2], [2], [1], [1], [0, 0, 0, 1, 1, 1], [0], [0]>} : vector<1x16x8xbf16>, vector<1x16x8xbf16>, vector<1x16x16xf32> -> vector<1x16x16xf32>
    "tpu.trace_stop"() : () -> ()
    %153 = vector.broadcast %19 : vector<1x1x16xf32> to vector<1x16x16xf32>
    %154 = arith.addf %152, %153 : vector<1x16x16xf32>
    %cst_33 = arith.constant dense<0xFF800000> : vector<1x16xf32>
    %155 = vector.multi_reduction <maximumf>, %154, %cst_33 [2] : vector<1x16x16xf32> to vector<1x16xf32>
    %156 = vector.shape_cast %155 : vector<1x16xf32> to vector<1x16x1xf32>
    %157 = vector.broadcast %156 : vector<1x16x1xf32> to vector<1x16x16xf32>
    %158 = arith.subf %154, %157 : vector<1x16x16xf32>
    %159 = math.exp %158 : vector<1x16x16xf32>
    %cst_34 = arith.constant dense<0.000000e+00> : vector<1x16xf32>
    %160 = vector.multi_reduction <add>, %159, %cst_34 [2] : vector<1x16x16xf32> to vector<1x16xf32>
    %161 = vector.shape_cast %160 : vector<1x16xf32> to vector<1x16x1xf32>
    %162 = tpu.reciprocal %161 {approx = true} : vector<1x16x1xf32> -> vector<1x16x1xf32>
    %163 = vector.broadcast %162 : vector<1x16x1xf32> to vector<1x16x16xf32>
    %164 = arith.mulf %159, %163 : vector<1x16x16xf32>
    %165 = arith.truncf %164 : vector<1x16x16xf32> to vector<1x16x16xbf16>
    "tpu.trace_start"() <{level = 10 : i32, message = "bqk,bkd->bqd"}> : () -> ()
    %cst_35 = arith.constant dense<0.000000e+00> : vector<1x16x8xf32>
    %166 = tpu.matmul %165, %151, %cst_35 {dimension_numbers = #tpu.dot_dimension_numbers<[2], [1], [1], [2], [0, 0, 0, 1, 1, 2], [0], [0]>} : vector<1x16x16xbf16>, vector<1x16x8xbf16>, vector<1x16x8xf32> -> vector<1x16x8xf32>
    "tpu.trace_stop"() : () -> ()
    %167 = vector.extract_strided_slice %13 {offsets = [0, 56], sizes = [16, 8], strides = [1, 1]} : vector<16x192xbf16> to vector<16x8xbf16>
    %168 = vector.shape_cast %167 : vector<16x8xbf16> to vector<1x16x8xbf16>
    %169 = vector.extract_strided_slice %13 {offsets = [0, 120], sizes = [16, 8], strides = [1, 1]} : vector<16x192xbf16> to vector<16x8xbf16>
    %170 = vector.shape_cast %169 : vector<16x8xbf16> to vector<1x16x8xbf16>
    %171 = vector.extract_strided_slice %13 {offsets = [0, 184], sizes = [16, 8], strides = [1, 1]} : vector<16x192xbf16> to vector<16x8xbf16>
    %172 = vector.shape_cast %171 : vector<16x8xbf16> to vector<1x16x8xbf16>
    "tpu.trace_start"() <{level = 10 : i32, message = "bqd,bkd->bqk"}> : () -> ()
    %cst_36 = arith.constant dense<0.000000e+00> : vector<1x16x16xf32>
    %173 = tpu.matmul %168, %170, %cst_36 {dimension_numbers = #tpu.dot_dimension_numbers<[2], [2], [1], [1], [0, 0, 0, 1, 1, 1], [0], [0]>} : vector<1x16x8xbf16>, vector<1x16x8xbf16>, vector<1x16x16xf32> -> vector<1x16x16xf32>
    "tpu.trace_stop"() : () -> ()
    %174 = vector.broadcast %19 : vector<1x1x16xf32> to vector<1x16x16xf32>
    %175 = arith.addf %173, %174 : vector<1x16x16xf32>
    %cst_37 = arith.constant dense<0xFF800000> : vector<1x16xf32>
    %176 = vector.multi_reduction <maximumf>, %175, %cst_37 [2] : vector<1x16x16xf32> to vector<1x16xf32>
    %177 = vector.shape_cast %176 : vector<1x16xf32> to vector<1x16x1xf32>
    %178 = vector.broadcast %177 : vector<1x16x1xf32> to vector<1x16x16xf32>
    %179 = arith.subf %175, %178 : vector<1x16x16xf32>
    %180 = math.exp %179 : vector<1x16x16xf32>
    %cst_38 = arith.constant dense<0.000000e+00> : vector<1x16xf32>
    %181 = vector.multi_reduction <add>, %180, %cst_38 [2] : vector<1x16x16xf32> to vector<1x16xf32>
    %182 = vector.shape_cast %181 : vector<1x16xf32> to vector<1x16x1xf32>
    %183 = tpu.reciprocal %182 {approx = true} : vector<1x16x1xf32> -> vector<1x16x1xf32>
    %184 = vector.broadcast %183 : vector<1x16x1xf32> to vector<1x16x16xf32>
    %185 = arith.mulf %180, %184 : vector<1x16x16xf32>
    %186 = arith.truncf %185 : vector<1x16x16xf32> to vector<1x16x16xbf16>
    "tpu.trace_start"() <{level = 10 : i32, message = "bqk,bkd->bqd"}> : () -> ()
    %cst_39 = arith.constant dense<0.000000e+00> : vector<1x16x8xf32>
    %187 = tpu.matmul %186, %172, %cst_39 {dimension_numbers = #tpu.dot_dimension_numbers<[2], [1], [1], [2], [0, 0, 0, 1, 1, 2], [0], [0]>} : vector<1x16x16xbf16>, vector<1x16x8xbf16>, vector<1x16x8xf32> -> vector<1x16x8xf32>
    "tpu.trace_stop"() : () -> ()
    %188 = tpu.concatenate %40, %61, %82, %103, %124, %145, %166, %187 in 2 : vector<1x16x8xf32>, vector<1x16x8xf32>, vector<1x16x8xf32>, vector<1x16x8xf32>, vector<1x16x8xf32>, vector<1x16x8xf32>, vector<1x16x8xf32>, vector<1x16x8xf32> -> vector<1x16x64xf32>
    %189 = vector.shape_cast %188 : vector<1x16x64xf32> to vector<16x64xf32>
    %190 = arith.truncf %189 : vector<16x64xf32> to vector<16x64xbf16>
    %c0_40 = arith.constant 0 : index
    %c0_41 = arith.constant 0 : index
    %191 = vector.load %arg10[%c0_40, %c0_41] : memref<16x64xf32, #tpu.memory_space<vmem>>, vector<16x64xf32>
    %192 = arith.index_cast %arg1 : i32 to index
    %c0_42 = arith.constant 0 : index
    %c0_43 = arith.constant 0 : index
    %193 = vector.load %arg6[%192, %c0_42, %c0_43] : memref<1x64x64xbf16, #tpu.memory_space<vmem>>, vector<1x64x64xbf16>
    %194 = vector.shape_cast %193 : vector<1x64x64xbf16> to vector<64x64xbf16>
    %cst_44 = arith.constant dense<0.000000e+00> : vector<16x64xf32>
    %195 = tpu.matmul %190, %194, %cst_44 {dimension_numbers = #tpu.dot_dimension_numbers<[1], [0], [0], [1], [0, 0, 1, 1], [], []>} : vector<16x64xbf16>, vector<64x64xbf16>, vector<16x64xf32> -> vector<16x64xf32>
    %196 = arith.addf %191, %195 : vector<16x64xf32>
    %c0_45 = arith.constant 0 : index
    %c0_46 = arith.constant 0 : index
    %197 = vector.load %arg10[%c0_45, %c0_46] : memref<16x64xf32, #tpu.memory_space<vmem>>, vector<16x64xf32>
    tpu.vector_store %arg10[%c0_45, %c0_46], %196 {strides = array<i32>} : memref<16x64xf32, #tpu.memory_space<vmem>>, vector<16x64xf32>,
    %c0_i32_47 = arith.constant 0 : i32
    %198 = arith.cmpi eq, %arg1, %c0_i32_47 : i32
    %199 = arith.extui %198 : i1 to i32
    %c0_i32_48 = arith.constant 0 : i32
    %200 = arith.cmpi ne, %199, %c0_i32_48 : i32
    scf.if %200 {
      %c0_49 = arith.constant 0 : index
      %c0_50 = arith.constant 0 : index
      %201 = vector.load %arg10[%c0_49, %c0_50] : memref<16x64xf32, #tpu.memory_space<vmem>>, vector<16x64xf32>
      %c0_51 = arith.constant 0 : index
      %c0_52 = arith.constant 0 : index
      %202 = vector.load %arg7[%c0_51, %c0_52] : memref<1x64xf32, #tpu.memory_space<vmem>>, vector<1x64xf32>
      %203 = vector.broadcast %202 : vector<1x64xf32> to vector<16x64xf32>
      %204 = arith.addf %201, %203 : vector<16x64xf32>
      %205 = vector.shape_cast %204 : vector<16x64xf32> to vector<1x16x64xf32>
      %c0_53 = arith.constant 0 : index
      %c0_54 = arith.constant 0 : index
      %c0_55 = arith.constant 0 : index
      %206 = vector.load %arg8[%c0_53, %c0_54, %c0_55] : memref<1x16x64xf32, #tpu.memory_space<vmem>>, vector<1x16x64xf32>
      tpu.vector_store %arg8[%c0_53, %c0_54, %c0_55], %205 {strides = array<i32>} : memref<1x16x64xf32, #tpu.memory_space<vmem>>, vector<1x16x64xf32>,
    } else {
    }
    return
  }
  func.func @transform_0(%arg0: i32, %arg1: i32) -> (i32, i32, i32) {
    %c0_i32 = arith.constant 0 : i32
    %c0_i32_0 = arith.constant 0 : i32
    %c0_i32_1 = arith.constant 0 : i32
    return %arg0, %c0_i32, %c0_i32_0 : i32, i32, i32
  }
  func.func @transform_1(%arg0: i32, %arg1: i32) -> (i32, i32) {
    %c0_i32 = arith.constant 0 : i32
    %c0_i32_0 = arith.constant 0 : i32
    %c0_i32_1 = arith.constant 0 : i32
    return %c0_i32, %c0_i32_0 : i32, i32
  }
  func.func @transform_2(%arg0: i32, %arg1: i32) -> (i32, i32, i32) {
    %c0_i32 = arith.constant 0 : i32
    %c0_i32_0 = arith.constant 0 : i32
    %c0_i32_1 = arith.constant 0 : i32
    %c0_i32_2 = arith.constant 0 : i32
    return %c0_i32, %c0_i32_0, %c0_i32_1 : i32, i32, i32
  }
  func.func @transform_3(%arg0: i32, %arg1: i32) -> (i32, i32, i32) {
    %c0_i32 = arith.constant 0 : i32
    %c0_i32_0 = arith.constant 0 : i32
    %c0_i32_1 = arith.constant 0 : i32
    %c0_i32_2 = arith.constant 0 : i32
    return %c0_i32, %c0_i32_0, %c0_i32_1 : i32, i32, i32
  }
  func.func @transform_4(%arg0: i32, %arg1: i32) -> (i32, i32, i32) {
    %c0_i32 = arith.constant 0 : i32
    %c0_i32_0 = arith.constant 0 : i32
    %c0_i32_1 = arith.constant 0 : i32
    %c0_i32_2 = arith.constant 0 : i32
    return %c0_i32, %c0_i32_0, %c0_i32_1 : i32, i32, i32
  }
  func.func @transform_5(%arg0: i32, %arg1: i32) -> (i32, i32) {
    %c0_i32 = arith.constant 0 : i32
    %c0_i32_0 = arith.constant 0 : i32
    %c0_i32_1 = arith.constant 0 : i32
    return %c0_i32, %c0_i32_0 : i32, i32
  }
  func.func @transform_6(%arg0: i32, %arg1: i32) -> (i32, i32, i32) {
    %c0_i32 = arith.constant 0 : i32
    %c0_i32_0 = arith.constant 0 : i32
    %c0_i32_1 = arith.constant 0 : i32
    return %arg0, %c0_i32, %c0_i32_0 : i32, i32, i32
  }
}

</mosaic_0001>

<llo_original>
// kernel: tpu_custom_call.1
$region0: #{tpu_custom_call.1}
  #allocation0 [shape = 'u32[]', space=smem, size = 0x4, offset = 0x4, fixed_abs, tag = 'smem constant byte address 0x4 - core index']
  #allocation1 [shape = 'u32[72,128]{1,0:T(1,128)}', space=vmem, size = 0x9000, scoped, tag = 'internal scratch']
  #allocation2 [shape = 'bf16[16,64]{1,0:T(8,128)(2,1)}', space=vmem, size = 0x1000, scoped, tag = 'scratch operand']
  #allocation3 [shape = 'f32[16,64]{1,0:T(8,128)}', space=vmem, size = 0x2000, scoped, tag = 'scratch operand']
  %s0 = inlined_call_operand.vmem [shape: bf16[2,16,64], index: 0, kind: input, shape index: {}]
  %s1 = inlined_call_operand.vmem [shape: f32[16,1], index: 1, kind: input, shape index: {}]
  %s2 = inlined_call_operand.hbm [shape: bf16[1,64,192], index: 2, kind: input, shape index: {}]
  %s3 = inlined_call_operand.vmem [shape: f32[1,1,192], index: 3, kind: input, shape index: {}]
  %s4 = inlined_call_operand.hbm [shape: bf16[1,64,64], index: 4, kind: input, shape index: {}]
  %s5 = inlined_call_operand.vmem [shape: f32[1,64], index: 5, kind: input, shape index: {}]
  %s6 = inlined_call_operand.hbm [shape: f32[2,16,64], index: 6, kind: output, shape index: {}]
  %s7 = sld [smem:[#allocation0]]
  $region73: #{tpu_custom_call.1} parent=0
    _
  %s9 = ssub.s32 1, %s7
  %s10 = scalar_select 0, %s9, %s7
  $region1: #{tpu_custom_call.1} parent=0
    #allocation4 [shape = 'u8[32768]{0}', space=vmem, size = 0x8000, scoped, tag = 'input window, operand 2, single buffered']
    #allocation5 [shape = 's32[2]{0}', space=sflag, size = 0x8, scoped, tag = 'scoped memory for tpu_custom_call.1']
    #allocation6 [shape = 's32[2]{0}', space=sflag, size = 0x8, scoped, tag = 'scoped memory for tpu_custom_call.1']
    #allocation7 [shape = 'u8[16384]{0}', space=vmem, size = 0x4000, scoped, tag = 'input window, operand 4, single buffered']
    #allocation8 [shape = 's32[1]{0}', space=sflag, size = 0x4, scoped, tag = 'scoped memory for tpu_custom_call.1']
    #allocation9 [shape = 'u8[16384]{0}', space=vmem, size = 0x4000, scoped, tag = 'output window, operand 0']
    %11 = vsyncpa [#allocation5], 0
    %12 = vsyncpa [#allocation8], 0
    %13 = vsyncpa [#allocation6], 0
    %s14 = scalar_lea.sflag [#allocation6], 1
    %15 = vsyncpa %s14, 0
    loop: start=0, step=1, limit=4
    $region2: #{tpu_custom_call.1} parent=1 // loop_pre_header
      _
    $region3: #{tpu_custom_call.1} parent=1 // loop_header
      %s17 = sphi 0, %s21
      %p18 = scmp.ge.s32.totalorder %s17, 4
      %s24 = sphi 0, %s36
      %s25 = sphi 0, %s32
      %s26 = sphi 0, %s24
      %s27 = sphi 0, %s25
      %s28 = sphi 0, %s26
      %s29 = sphi 0, %s27
      %s39 = sphi 0, %s41
      %s42 = sphi 0, %s39
      %s43 = sphi 0, %s42
      %s59 = sphi 0, %s43
      %s63 = sphi 0, %s63
      %s65 = sphi 0, %s63
      %s66 = sphi 0, %s65
      %s80 = sphi 0, %s66
      %s84 = sphi 0, %s84
      %s86 = sphi 0, %s84
      %s87 = sphi 0, %s86
      %s101 = sphi 0, %s87
      %s105 = sphi 0, %s105
      %s107 = sphi 0, %s105
      %s108 = sphi 0, %s107
      %s122 = sphi 0, %s108
      %s126 = sphi 0, %s126
      %s128 = sphi 0, %s126
      %s129 = sphi 0, %s128
      %s143 = sphi 0, %s129
      %s147 = sphi 0, %s147
      %s149 = sphi 0, %s147
      %s150 = sphi 0, %s149
      %s164 = sphi 0, %s150
      %s170 = sphi 0, %s172
      %s173 = sphi 0, %s170
      %s174 = sphi 0, %s173
      %s190 = sphi 0, %s174
    $region4: #{tpu_custom_call.1} parent=1 // loop_header_branch
      %20 = sbr.rel (%p18) target = $region8
    $region5: #{tpu_custom_call.1} parent=1 // loop_body
      %s22 = ssub.s32 %s17, 1
      %s23 = ssub.s32 %s17, 2
      %s30 = sadd.s32 1, %s25
      %p31 = scmp.ge.s32.totalorder %s30, 1
      %s32 = scalar_select %p31, 0, %s30
      %s33 = sadd.s32 1, %s24
      %s34 = scalar_select %p31, %s33, %s24
      %p35 = scmp.ge.s32.totalorder %s34, 2
      %s36 = scalar_select %p35, 0, %s34
      %s37 = ssub.s32 %s24, %s36
      %p38 = scmp.eq.s32.totalorder %s37, 0
      %s40 = sadd.s32 %s39, 1
      %s41 = scalar_select %p38, %s39, %s40
      %p44 = pneg %p38
      %p45 = scmp.eq.s32.totalorder %s17, 1
      %p46 = por %p44, %p45
      %p47 = scmp.ne.s32.totalorder %s39, %s42
      %p48 = scmp.eq.s32.totalorder %s17, 0
      %p49 = por %p47, %p48
      %p50 = scmp.ne.s32.totalorder %s39, %s42
      %p51 = scmp.eq.s32.totalorder %s22, 1
      %p52 = por %p50, %p51
      %p53 = scmp.ne.s32.totalorder %s42, %s43
      %p54 = scmp.eq.s32.totalorder %s22, 0
      %p55 = por %p53, %p54
      %p56 = scmp.ne.s32.totalorder %s42, %s43
      %p57 = scmp.eq.s32.totalorder %s23, 1
      %p58 = por %p56, %p57
      %p60 = scmp.ne.s32.totalorder %s43, %s59
      %p61 = scmp.eq.s32.totalorder %s23, 0
      %p62 = por %p60, %p61
      %s64 = sadd.s32 %s63, 1
      %p67 = scmp.eq.s32.totalorder %s17, 1
      %p68 = scmp.ne.s32.totalorder %s63, %s65
      %p69 = scmp.eq.s32.totalorder %s17, 0
      %p70 = por %p68, %p69
      %p71 = scmp.ne.s32.totalorder %s63, %s65
      %p72 = scmp.eq.s32.totalorder %s22, 1
      %p73 = por %p71, %p72
      %p74 = scmp.ne.s32.totalorder %s65, %s66
      %p75 = scmp.eq.s32.totalorder %s22, 0
      %p76 = por %p74, %p75
      %p77 = scmp.ne.s32.totalorder %s65, %s66
      %p78 = scmp.eq.s32.totalorder %s23, 1
      %p79 = por %p77, %p78
      %p81 = scmp.ne.s32.totalorder %s66, %s80
      %p82 = scmp.eq.s32.totalorder %s23, 0
      %p83 = por %p81, %p82
      %s85 = sadd.s32 %s84, 1
      %p88 = scmp.eq.s32.totalorder %s17, 1
      %p89 = scmp.ne.s32.totalorder %s84, %s86
      %p90 = scmp.eq.s32.totalorder %s17, 0
      %p91 = por %p89, %p90
      %p92 = scmp.ne.s32.totalorder %s84, %s86
      %p93 = scmp.eq.s32.totalorder %s22, 1
      %p94 = por %p92, %p93
      %p95 = scmp.ne.s32.totalorder %s86, %s87
      %p96 = scmp.eq.s32.totalorder %s22, 0
      %p97 = por %p95, %p96
      %p98 = scmp.ne.s32.totalorder %s86, %s87
      %p99 = scmp.eq.s32.totalorder %s23, 1
      %p100 = por %p98, %p99
      %p102 = scmp.ne.s32.totalorder %s87, %s101
      %p103 = scmp.eq.s32.totalorder %s23, 0
      %p104 = por %p102, %p103
      %s106 = sadd.s32 %s105, 1
      %p109 = scmp.eq.s32.totalorder %s17, 1
      %p110 = scmp.ne.s32.totalorder %s105, %s107
      %p111 = scmp.eq.s32.totalorder %s17, 0
      %p112 = por %p110, %p111
      %p113 = scmp.ne.s32.totalorder %s105, %s107
      %p114 = scmp.eq.s32.totalorder %s22, 1
      %p115 = por %p113, %p114
      %p116 = scmp.ne.s32.totalorder %s107, %s108
      %p117 = scmp.eq.s32.totalorder %s22, 0
      %p118 = por %p116, %p117
      %p119 = scmp.ne.s32.totalorder %s107, %s108
      %p120 = scmp.eq.s32.totalorder %s23, 1
      %p121 = por %p119, %p120
      %p123 = scmp.ne.s32.totalorder %s108, %s122
      %p124 = scmp.eq.s32.totalorder %s23, 0
      %p125 = por %p123, %p124
      %s127 = sadd.s32 %s126, 1
      %p130 = scmp.eq.s32.totalorder %s17, 1
      %p131 = scmp.ne.s32.totalorder %s126, %s128
      %p132 = scmp.eq.s32.totalorder %s17, 0
      %p133 = por %p131, %p132
      %p134 = scmp.ne.s32.totalorder %s126, %s128
      %p135 = scmp.eq.s32.totalorder %s22, 1
      %p136 = por %p134, %p135
      %p137 = scmp.ne.s32.totalorder %s128, %s129
      %p138 = scmp.eq.s32.totalorder %s22, 0
      %p139 = por %p137, %p138
      %p140 = scmp.ne.s32.totalorder %s128, %s129
      %p141 = scmp.eq.s32.totalorder %s23, 1
      %p142 = por %p140, %p141
      %p144 = scmp.ne.s32.totalorder %s129, %s143
      %p145 = scmp.eq.s32.totalorder %s23, 0
      %p146 = por %p144, %p145
      %s148 = sadd.s32 %s147, 1
      %p151 = scmp.eq.s32.totalorder %s17, 1
      %p152 = scmp.ne.s32.totalorder %s147, %s149
      %p153 = scmp.eq.s32.totalorder %s17, 0
      %p154 = por %p152, %p153
      %p155 = scmp.ne.s32.totalorder %s147, %s149
      %p156 = scmp.eq.s32.totalorder %s22, 1
      %p157 = por %p155, %p156
      %p158 = scmp.ne.s32.totalorder %s149, %s150
      %p159 = scmp.eq.s32.totalorder %s22, 0
      %p160 = por %p158, %p159
      %p161 = scmp.ne.s32.totalorder %s149, %s150
      %p162 = scmp.eq.s32.totalorder %s23, 1
      %p163 = por %p161, %p162
      %p165 = scmp.ne.s32.totalorder %s150, %s164
      %p166 = scmp.eq.s32.totalorder %s23, 0
      %p167 = por %p165, %p166
      %s168 = ssub.s32 %s24, %s36
      %p169 = scmp.eq.s32.totalorder %s168, 0
      %s171 = sadd.s32 %s170, 1
      %s172 = scalar_select %p169, %s170, %s171
      %p175 = pneg %p169
      %p176 = scmp.eq.s32.totalorder %s17, 1
      %p177 = por %p175, %p176
      %p178 = scmp.ne.s32.totalorder %s170, %s173
      %p179 = scmp.eq.s32.totalorder %s17, 0
      %p180 = por %p178, %p179
      %p181 = scmp.ne.s32.totalorder %s170, %s173
      %p182 = scmp.eq.s32.totalorder %s22, 1
      %p183 = por %p181, %p182
      %p184 = scmp.ne.s32.totalorder %s173, %s174
      %p185 = scmp.eq.s32.totalorder %s22, 0
      %p186 = por %p184, %p185
      %p187 = scmp.ne.s32.totalorder %s173, %s174
      %p188 = scmp.eq.s32.totalorder %s23, 1
      %p189 = por %p187, %p188
      %p191 = scmp.ne.s32.totalorder %s174, %s190
      %p192 = scmp.eq.s32.totalorder %s23, 0
      %p193 = por %p191, %p192
      %p194 = scmp.le.s32.totalorder 1, %s17
      %p195 = scmp.lt.s32.totalorder %s17, 3
      %p196 = pnand %p194, %p195
      %p197 = pneg %p196
      // Predicated region
      $region9: #{tpu_custom_call.1} parent=5 // pred_check
        _
      $region10: #{tpu_custom_call.1} parent=5 // pred_check_branch
        %199 = sbr.rel (%p196) target = $region12
      $region11: #{tpu_custom_call.1} parent=5 // pred_region
        %s200 = ssub.s32 %s17, 1
        // Predicated region
        $region13: #{tpu_custom_call.1} parent=11 // pred_check
          %p201 = pneg %p76
        $region14: #{tpu_custom_call.1} parent=11 // pred_check_branch
          %203 = sbr.rel (%p201) target = $region16
        $region15: #{tpu_custom_call.1} parent=11 // pred_region
          _
        $region16: #{tpu_custom_call.1} parent=11 // pred_fallthru
          _
        // Predicated region
        $region17: #{tpu_custom_call.1} parent=11 // pred_check
          %p204 = pneg %p97
        $region18: #{tpu_custom_call.1} parent=11 // pred_check_branch
          %206 = sbr.rel (%p204) target = $region20
        $region19: #{tpu_custom_call.1} parent=11 // pred_region
          %208 = vsyncadd [#allocation5], 0
          %s209 = sshll.u32 %s2, 4
          %s210 = int_to_ptr.hbm [resolvable:$true] %s209
          %s211 = sshll.u32 [#allocation4], 4
          %s212 = int_to_ptr.vmem [resolvable:$true] %s211
          %217 = dma.hbm_to_vmem [thread:$0]  %s210, 1024, %s212, [#allocation5], 128, 128, 8
        $region20: #{tpu_custom_call.1} parent=11 // pred_fallthru
          _
        // Predicated region
        $region21: #{tpu_custom_call.1} parent=11 // pred_check
          %p218 = pneg %p118
        $region22: #{tpu_custom_call.1} parent=11 // pred_check_branch
          %220 = sbr.rel (%p218) target = $region24
        $region23: #{tpu_custom_call.1} parent=11 // pred_region
          _
        $region24: #{tpu_custom_call.1} parent=11 // pred_fallthru
          _
        // Predicated region
        $region25: #{tpu_custom_call.1} parent=11 // pred_check
          %p221 = pneg %p139
        $region26: #{tpu_custom_call.1} parent=11 // pred_check_branch
          %223 = sbr.rel (%p221) target = $region28
        $region27: #{tpu_custom_call.1} parent=11 // pred_region
          %225 = vsyncadd [#allocation8], 0
          %s226 = sshll.u32 %s4, 4
          %s227 = int_to_ptr.hbm [resolvable:$true] %s226
          %s228 = sshll.u32 [#allocation7], 4
          %s229 = int_to_ptr.vmem [resolvable:$true] %s228
          %234 = dma.hbm_to_vmem [thread:$0]  %s227, 512, %s229, [#allocation8], 64, 64, 4
        $region28: #{tpu_custom_call.1} parent=11 // pred_fallthru
          _
        // Predicated region
        $region29: #{tpu_custom_call.1} parent=11 // pred_check
          %p235 = pneg %p160
        $region30: #{tpu_custom_call.1} parent=11 // pred_check_branch
          %237 = sbr.rel (%p235) target = $region32
        $region31: #{tpu_custom_call.1} parent=11 // pred_region
          _
        $region32: #{tpu_custom_call.1} parent=11 // pred_fallthru
          _
      $region12: #{tpu_custom_call.1} parent=5 // pred_fallthru
        _
      %p238 = scmp.lt.s32.totalorder %s17, 2
      // Predicated region
      $region33: #{tpu_custom_call.1} parent=5 // pred_check
        %p239 = pneg %p238
      $region34: #{tpu_custom_call.1} parent=5 // pred_check_branch
        %241 = sbr.rel (%p239) target = $region36
      $region35: #{tpu_custom_call.1} parent=5 // pred_region
        // Predicated region
        $region37: #{tpu_custom_call.1} parent=35 // pred_check
          %p242 = pneg %p49
        $region38: #{tpu_custom_call.1} parent=35 // pred_check_branch
          %244 = sbr.rel (%p242) target = $region40
        $region39: #{tpu_custom_call.1} parent=35 // pred_region
          %p245 = scmp.lt.s32.totalorder %s24, 1
          %s246 = scalar_select %p245, %s24, 1
          %s247 = smul.addr %s246, 2
          %s248 = smul.addr %s247, 4
          %s249 = scalar_lea.vmem %s0, %s248
        $region40: #{tpu_custom_call.1} parent=35 // pred_fallthru
          _
      $region36: #{tpu_custom_call.1} parent=5 // pred_fallthru
        _
      %p250 = scmp.le.s32.totalorder 1, %s17
      %p251 = scmp.lt.s32.totalorder %s17, 3
      %p252 = pnand %p250, %p251
      %p253 = pneg %p252
      // Predicated region
      $region41: #{tpu_custom_call.1} parent=5 // pred_check
        _
      $region42: #{tpu_custom_call.1} parent=5 // pred_check_branch
        %255 = sbr.rel (%p252) target = $region44
      $region43: #{tpu_custom_call.1} parent=5 // pred_region
        %s256 = ssub.s32 %s17, 1
        // Predicated region
        $region45: #{tpu_custom_call.1} parent=43 // pred_check
          %p257 = pneg %p97
        $region46: #{tpu_custom_call.1} parent=43 // pred_check_branch
          %259 = sbr.rel (%p257) target = $region48
        $region47: #{tpu_custom_call.1} parent=43 // pred_region
          %261 = dma.done [#allocation5], 1024
        $region48: #{tpu_custom_call.1} parent=43 // pred_fallthru
          _
        // Predicated region
        $region49: #{tpu_custom_call.1} parent=43 // pred_check
          %p262 = pneg %p139
        $region50: #{tpu_custom_call.1} parent=43 // pred_check_branch
          %264 = sbr.rel (%p262) target = $region52
        $region51: #{tpu_custom_call.1} parent=43 // pred_region
          %266 = dma.done [#allocation8], 512
        $region52: #{tpu_custom_call.1} parent=43 // pred_fallthru
          _
        %p267 = scmp.lt.s32.totalorder %s26, 1
        %s268 = scalar_select %p267, %s26, 1
        %s269 = smul.addr %s268, 2
        %s270 = smul.addr %s269, 4
        %s271 = scalar_lea.vmem %s0, %s270
        %p272 = pneg %p55
        %p273 = pneg %p52
        %p274 = pneg %p76
        %p275 = pneg %p73
        %p276 = pneg %p97
        %p277 = pneg %p94
        %p278 = pneg %p118
        %p279 = pneg %p115
        %p280 = pneg %p139
        %p281 = pneg %p136
        %p282 = pneg %p160
        %p283 = pneg %p157
        %p284 = pneg %p186
        %p285 = pneg %p183
        %s286 = sand.u32 %s173, 1
        %s287 = scalar_lea.sflag [#allocation6], %s286
        %s288 = sand.u32 %s173, 1
        %s289 = smul.addr %s288, 16
        %s290 = scalar_lea.vmem [#allocation9], %s289
        %p291 = scmp.lt.s32.totalorder %s26, 1
        %s292 = scalar_select %p291, %s26, 1
        %s293 = smul.addr %s292, 2
        %s294 = smul.addr %s293, 4
        %s295 = scalar_lea.vmem %s0, %s294
        %p297 = scmp.eq.s32.totalorder %s27, 0
        // Predicated region
        $region53: #{tpu_custom_call.1} parent=43 // pred_check
          %p298 = pneg %p297
        $region54: #{tpu_custom_call.1} parent=43 // pred_check_branch
          %300 = sbr.rel (%p298) target = $region56
        $region55: #{tpu_custom_call.1} parent=43 // pred_region
          %v301 = vld [vmem:[%s295] sm:$0xf]
          %v302 = vld [vmem:[%s295 + $0x4] sm:$0xf]
          %v303 = vunpack.c.l.bf16 %v301
          %v304 = vunpack.c.l.bf16 %v302
          %v305 = vld [vmem:[%s1] sm:$0xff]
          %v306 = vld [vmem:[%s1 + $0x8] sm:$0xff]
          %308 = vset.pattern.permute.xlu0 0
          %309 = vperm.xlu0 %308, %v305
          %v310 = vpop.permute.xlu0 %309
          %313 = vset.pattern.permute.xlu0 0
          %314 = vperm.xlu0 %313, %v306
          %v315 = vpop.permute.xlu0 %314
          %v317 = vmul.f32 %v303, %v310
          %v318 = vmul.f32 %v304, %v315
          %v319 = vpack.c.bf16 %v317, %v317
          %v320 = vpack.c.bf16 %v318, %v318
          %vm321 = vcmask 519168
          %322 = vst.msk [vmem:[#allocation2] sm:$0xf] %vm321, %v319
          %323 = vst.msk [vmem:[#allocation2 + $0x4] sm:$0xf] %vm321, %v320
          %vm324 = vcmask 523264
          %325 = vst.msk [vmem:[#allocation3] sm:$0xff] %vm324, 0.0
          %326 = vst.msk [vmem:[#allocation3 + $0x8] sm:$0xff] %vm324, 0.0
        $region56: #{tpu_custom_call.1} parent=43 // pred_fallthru
          _
        %v327 = vld [vmem:[#allocation2] sm:$0xf]
        %v328 = vld [vmem:[#allocation2 + $0x4] sm:$0xf]
        %s329 = smul.u32 %s27, 16
        %s330 = smul.addr %s329, 4
        %s331 = scalar_lea.vmem [#allocation4], %s330
        %v332 = vld [vmem:[%s331] sm:$0xff]
        %v333 = vld [vmem:[%s331 + $0x8] sm:$0xff]
        %v334 = vld [vmem:[%s331 + $0x10] sm:$0xff]
        %v335 = vld [vmem:[%s331 + $0x18] sm:$0xff]
        %v336 = vld [vmem:[%s331 + $0x20] sm:$0xff]
        %v337 = vld [vmem:[%s331 + $0x28] sm:$0xff]
        %v338 = vld [vmem:[%s331 + $0x30] sm:$0xff]
        %v339 = vld [vmem:[%s331 + $0x38] sm:$0xff]
        %s340 = smul.u32 %s27, 2
        %s341 = scalar_lea.vmem %s3, %s340
        %v342 = vld [vmem:[%s341] sm:$0x3]
        %v344 = vperm.slane %v342, 0
        %v345 = vperm.slane %v342, 1
        %v350 = vunpack.c.l.b16 %v327
        %v351 = vunpack.c.l.b16 %v328
        %v352 = vpack.c.b16 %v351, %v350
        %v361 = vunpack.c.l.b16 %v332
        %v362 = vunpack.c.h.b16 %v332
        %v363 = vunpack.c.l.b16 %v333
        %v364 = vunpack.c.h.b16 %v333
        %v365 = vunpack.c.l.b16 %v334
        %v366 = vunpack.c.h.b16 %v334
        %v367 = vunpack.c.l.b16 %v335
        %v368 = vunpack.c.h.b16 %v335
        %v369 = vunpack.c.l.b16 %v336
        %v370 = vunpack.c.h.b16 %v336
        %v371 = vunpack.c.l.b16 %v337
        %v372 = vunpack.c.h.b16 %v337
        %v373 = vunpack.c.l.b16 %v338
        %v374 = vunpack.c.h.b16 %v338
        %v375 = vunpack.c.l.b16 %v339
        %v376 = vunpack.c.h.b16 %v339
        %v377 = vpack.c.b16 %v363, %v361
        %v378 = vpack.c.b16 %v364, %v362
        %v379 = vpack.c.b16 %v367, %v365
        %v380 = vpack.c.b16 %v368, %v366
        %v381 = vpack.c.b16 %v371, %v369
        %v382 = vpack.c.b16 %v372, %v370
        %v383 = vpack.c.b16 %v375, %v373
        %v384 = vpack.c.b16 %v376, %v374
        %vm393 = vcmask 523264
        %v395 = vsel %vm393, %v352, 0
        %397 = vmatpush.bf16.msra.mxu0 0
        %398 = vmatpush.bf16.msra.mxu0 0
        %399 = vmatpush.bf16.msra.mxu0 0
        %400 = vmatpush.bf16.msra.mxu0 0
        %401 = vmatpush.bf16.msra.mxu0 %v383
        %402 = vmatpush.bf16.msra.mxu0 %v381
        %403 = vmatpush.bf16.msra.mxu0 %v379
        %404 = vmatpush.bf16.msra.mxu0 %v377
        %405 = vmatmul.bf16.gmra.mxu0 %v395
        %v406 = vpop.f32.mrf.mxu0
        %v407 = vadd.f32 %v344, %v406
        %v408 = vpop.f32.mrf.mxu0
        %v409 = vadd.f32 %v344, %v408
        %410 = vdwg.mxu0
        %411 = vmatpush.bf16.msra.mxu0 0
        %412 = vmatpush.bf16.msra.mxu0 0
        %413 = vmatpush.bf16.msra.mxu0 0
        %414 = vmatpush.bf16.msra.mxu0 0
        %415 = vmatpush.bf16.msra.mxu0 %v384
        %416 = vmatpush.bf16.msra.mxu0 %v382
        %417 = vmatpush.bf16.msra.mxu0 %v380
        %418 = vmatpush.bf16.msra.mxu0 %v378
        %419 = vmatmul.bf16.gmra.mxu0 %v395
        %v420 = vpop.f32.mrf.mxu0
        %v421 = vadd.f32 %v345, %v420
        %v422 = vpop.f32.mrf.mxu0
        %v423 = vadd.f32 %v345, %v422
        %424 = vdwg.mxu0
        %v425 = vpack.c.bf16 %v421, %v407
        %v426 = vpack.c.bf16 %v423, %v409
        %v427 = vlaneseq
        %v428 = vand.u32 %v427, 127
        %vm429 = vcmp.lt.s32.totalorder %v428, 12
        %v430 = vsel %vm429, 0.0, -1e+30
        %v433 = vrot.slane %v425, 4
        %v434 = vrot.slane %v426, 4
        %v435 = vunpack.c.l.b16 %v425
        %v436 = vunpack.c.l.b16 %v426
        %v437 = vpack.c.b16 %v436, %v435
        %438 = vrot.lane.b32.xlu0 %v437, 64
        %v439 = vpop.permute.xlu0 %438
        %vm440 = vcmask 64512
        %v442 = vsel %vm440, %v437, 0
        %v445 = vsel %vm440, %v439, 0
        %447 = vmatpush.bf16.xpose.msra.mxu0 0
        %448 = vmatpush.bf16.xpose.msra.mxu0 0
        %449 = vmatpush.bf16.xpose.msra.mxu0 0
        %450 = vmatpush.bf16.xpose.msra.mxu0 0
        %451 = vmatpush.bf16.xpose.msra.mxu0 0
        %452 = vmatpush.bf16.xpose.msra.mxu0 0
        %453 = vmatpush.bf16.xpose.msra.mxu0 0
        %454 = vmatpush.bf16.xpose.msra.mxu0 %v445
        %455 = vmatmul.bf16.gmra.mxu0 %v442
        %v456 = vpop.f32.mrf.mxu0
        %v457 = vadd.f32 %v430, %v456
        %v458 = vpop.f32.mrf.mxu0
        %v459 = vadd.f32 %v430, %v458
        %460 = vdwg.mxu0
        %vm461 = vcmask 130048
        %v462 = vsel %vm461, %v457, -inf
        %463 = vmax.xlane.f32.xlu0 %v462
        %v464 = vpop.xlane.xlu0 %463
        %v465 = vsel %vm461, %v459, -inf
        %466 = vmax.xlane.f32.xlu0 %v465
        %v467 = vpop.xlane.xlu0 %466
        %v468 = vsub.f32 %v457, %v464
        %v469 = vsub.f32 %v459, %v467
        %v470 = vmul.f32 %v468, 1.442695
        %v471 = vpow.pop %v470
        %v472 = vmul.f32 %v469, 1.442695
        %v473 = vpow.pop %v472
        %v474 = vsel %vm461, %v471, 0.0
        %475 = vadd.xlane.f32.xlu0 %v474
        %v476 = vpop.xlane.xlu0 %475
        %v477 = vsel %vm461, %v473, 0.0
        %478 = vadd.xlane.f32.xlu0 %v477
        %v479 = vpop.xlane.xlu0 %478
        %v480 = vrcp.pop %v476
        %v481 = vrcp.pop %v479
        %v482 = vmul.f32 %v471, %v480
        %v483 = vmul.f32 %v473, %v481
        %v484 = vpack.c.bf16 %v482, %v482
        %v485 = vpack.c.bf16 %v483, %v483
        %v488 = vunpack.c.l.b16 %v484
        %v489 = vunpack.c.l.b16 %v485
        %v490 = vpack.c.b16 %v489, %v488
        %v491 = vunpack.c.l.b16 %v433
        %v492 = vunpack.c.l.b16 %v434
        %v493 = vpack.c.b16 %v492, %v491
        %v496 = vsel %vm461, %v490, 0
        %498 = vmatpush.bf16.msra.mxu0 0
        %499 = vmatpush.bf16.msra.mxu0 0
        %500 = vmatpush.bf16.msra.mxu0 0
        %501 = vmatpush.bf16.msra.mxu0 0
        %502 = vmatpush.bf16.msra.mxu0 0
        %503 = vmatpush.bf16.msra.mxu0 0
        %504 = vmatpush.bf16.msra.mxu0 0
        %505 = vmatpush.bf16.msra.mxu0 %v493
        %506 = vmatmul.bf16.gmra.mxu0 %v496
        %v507 = vpop.f32.mrf.mxu0
        %v508 = vadd.f32 0.0, %v507
        %v509 = vpop.f32.mrf.mxu0
        %v510 = vadd.f32 0.0, %v509
        %511 = vdwg.mxu0
        %512 = vrot.lane.b32.xlu0 %v425, 120
        %v513 = vpop.permute.xlu0 %512
        %514 = vrot.lane.b32.xlu0 %v426, 120
        %v515 = vpop.permute.xlu0 %514
        %v516 = vrot.slane %v513, 4
        %v517 = vrot.slane %v515, 4
        %518 = vrot.lane.b32.xlu0 %v437, 120
        %v519 = vpop.permute.xlu0 %518
        %520 = vrot.lane.b32.xlu0 %v437, 56
        %v521 = vpop.permute.xlu0 %520
        %v523 = vsel %vm440, %v519, 0
        %v526 = vsel %vm440, %v521, 0
        %528 = vmatpush.bf16.xpose.msra.mxu0 0
        %529 = vmatpush.bf16.xpose.msra.mxu0 0
        %530 = vmatpush.bf16.xpose.msra.mxu0 0
        %531 = vmatpush.bf16.xpose.msra.mxu0 0
        %532 = vmatpush.bf16.xpose.msra.mxu0 0
        %533 = vmatpush.bf16.xpose.msra.mxu0 0
        %534 = vmatpush.bf16.xpose.msra.mxu0 0
        %535 = vmatpush.bf16.xpose.msra.mxu0 %v526
        %536 = vmatmul.bf16.gmra.mxu0 %v523
        %v537 = vpop.f32.mrf.mxu0
        %v538 = vadd.f32 %v430, %v537
        %v539 = vpop.f32.mrf.mxu0
        %v540 = vadd.f32 %v430, %v539
        %541 = vdwg.mxu0
        %v542 = vsel %vm461, %v538, -inf
        %543 = vmax.xlane.f32.xlu0 %v542
        %v544 = vpop.xlane.xlu0 %543
        %v545 = vsel %vm461, %v540, -inf
        %546 = vmax.xlane.f32.xlu0 %v545
        %v547 = vpop.xlane.xlu0 %546
        %v548 = vsub.f32 %v538, %v544
        %v549 = vsub.f32 %v540, %v547
        %v550 = vmul.f32 %v548, 1.442695
        %v551 = vpow.pop %v550
        %v552 = vmul.f32 %v549, 1.442695
        %v553 = vpow.pop %v552
        %v554 = vsel %vm461, %v551, 0.0
        %555 = vadd.xlane.f32.xlu0 %v554
        %v556 = vpop.xlane.xlu0 %555
        %v557 = vsel %vm461, %v553, 0.0
        %558 = vadd.xlane.f32.xlu0 %v557
        %v559 = vpop.xlane.xlu0 %558
        %v560 = vrcp.pop %v556
        %v561 = vrcp.pop %v559
        %v562 = vmul.f32 %v551, %v560
        %v563 = vmul.f32 %v553, %v561
        %v564 = vpack.c.bf16 %v562, %v562
        %v565 = vpack.c.bf16 %v563, %v563
        %v568 = vunpack.c.l.b16 %v564
        %v569 = vunpack.c.l.b16 %v565
        %v570 = vpack.c.b16 %v569, %v568
        %v571 = vunpack.c.l.b16 %v516
        %v572 = vunpack.c.l.b16 %v517
        %v573 = vpack.c.b16 %v572, %v571
        %v576 = vsel %vm461, %v570, 0
        %578 = vmatpush.bf16.msra.mxu0 0
        %579 = vmatpush.bf16.msra.mxu0 0
        %580 = vmatpush.bf16.msra.mxu0 0
        %581 = vmatpush.bf16.msra.mxu0 0
        %582 = vmatpush.bf16.msra.mxu0 0
        %583 = vmatpush.bf16.msra.mxu0 0
        %584 = vmatpush.bf16.msra.mxu0 0
        %585 = vmatpush.bf16.msra.mxu0 %v573
        %586 = vmatmul.bf16.gmra.mxu0 %v576
        %v587 = vpop.f32.mrf.mxu0
        %v588 = vadd.f32 0.0, %v587
        %v589 = vpop.f32.mrf.mxu0
        %v590 = vadd.f32 0.0, %v589
        %591 = vdwg.mxu0
        %592 = vrot.lane.b32.xlu0 %v425, 112
        %v593 = vpop.permute.xlu0 %592
        %594 = vrot.lane.b32.xlu0 %v426, 112
        %v595 = vpop.permute.xlu0 %594
        %v596 = vrot.slane %v593, 4
        %v597 = vrot.slane %v595, 4
        %598 = vrot.lane.b32.xlu0 %v437, 112
        %v599 = vpop.permute.xlu0 %598
        %600 = vrot.lane.b32.xlu0 %v437, 48
        %v601 = vpop.permute.xlu0 %600
        %v603 = vsel %vm440, %v599, 0
        %v606 = vsel %vm440, %v601, 0
        %608 = vmatpush.bf16.xpose.msra.mxu0 0
        %609 = vmatpush.bf16.xpose.msra.mxu0 0
        %610 = vmatpush.bf16.xpose.msra.mxu0 0
        %611 = vmatpush.bf16.xpose.msra.mxu0 0
        %612 = vmatpush.bf16.xpose.msra.mxu0 0
        %613 = vmatpush.bf16.xpose.msra.mxu0 0
        %614 = vmatpush.bf16.xpose.msra.mxu0 0
        %615 = vmatpush.bf16.xpose.msra.mxu0 %v606
        %616 = vmatmul.bf16.gmra.mxu0 %v603
        %v617 = vpop.f32.mrf.mxu0
        %v618 = vadd.f32 %v430, %v617
        %v619 = vpop.f32.mrf.mxu0
        %v620 = vadd.f32 %v430, %v619
        %621 = vdwg.mxu0
        %v622 = vsel %vm461, %v618, -inf
        %623 = vmax.xlane.f32.xlu0 %v622
        %v624 = vpop.xlane.xlu0 %623
        %v625 = vsel %vm461, %v620, -inf
        %626 = vmax.xlane.f32.xlu0 %v625
        %v627 = vpop.xlane.xlu0 %626
        %v628 = vsub.f32 %v618, %v624
        %v629 = vsub.f32 %v620, %v627
        %v630 = vmul.f32 %v628, 1.442695
        %v631 = vpow.pop %v630
        %v632 = vmul.f32 %v629, 1.442695
        %v633 = vpow.pop %v632
        %v634 = vsel %vm461, %v631, 0.0
        %635 = vadd.xlane.f32.xlu0 %v634
        %v636 = vpop.xlane.xlu0 %635
        %v637 = vsel %vm461, %v633, 0.0
        %638 = vadd.xlane.f32.xlu0 %v637
        %v639 = vpop.xlane.xlu0 %638
        %v640 = vrcp.pop %v636
        %v641 = vrcp.pop %v639
        %v642 = vmul.f32 %v631, %v640
        %v643 = vmul.f32 %v633, %v641
        %v644 = vpack.c.bf16 %v642, %v642
        %v645 = vpack.c.bf16 %v643, %v643
        %v648 = vunpack.c.l.b16 %v644
        %v649 = vunpack.c.l.b16 %v645
        %v650 = vpack.c.b16 %v649, %v648
        %v651 = vunpack.c.l.b16 %v596
        %v652 = vunpack.c.l.b16 %v597
        %v653 = vpack.c.b16 %v652, %v651
        %v656 = vsel %vm461, %v650, 0
        %658 = vmatpush.bf16.msra.mxu0 0
        %659 = vmatpush.bf16.msra.mxu0 0
        %660 = vmatpush.bf16.msra.mxu0 0
        %661 = vmatpush.bf16.msra.mxu0 0
        %662 = vmatpush.bf16.msra.mxu0 0
        %663 = vmatpush.bf16.msra.mxu0 0
        %664 = vmatpush.bf16.msra.mxu0 0
        %665 = vmatpush.bf16.msra.mxu0 %v653
        %666 = vmatmul.bf16.gmra.mxu0 %v656
        %v667 = vpop.f32.mrf.mxu0
        %v668 = vadd.f32 0.0, %v667
        %v669 = vpop.f32.mrf.mxu0
        %v670 = vadd.f32 0.0, %v669
        %671 = vdwg.mxu0
        %672 = vrot.lane.b32.xlu0 %v425, 104
        %v673 = vpop.permute.xlu0 %672
        %674 = vrot.lane.b32.xlu0 %v426, 104
        %v675 = vpop.permute.xlu0 %674
        %v676 = vrot.slane %v673, 4
        %v677 = vrot.slane %v675, 4
        %678 = vrot.lane.b32.xlu0 %v437, 104
        %v679 = vpop.permute.xlu0 %678
        %680 = vrot.lane.b32.xlu0 %v437, 40
        %v681 = vpop.permute.xlu0 %680
        %v683 = vsel %vm440, %v679, 0
        %v686 = vsel %vm440, %v681, 0
        %688 = vmatpush.bf16.xpose.msra.mxu0 0
        %689 = vmatpush.bf16.xpose.msra.mxu0 0
        %690 = vmatpush.bf16.xpose.msra.mxu0 0
        %691 = vmatpush.bf16.xpose.msra.mxu0 0
        %692 = vmatpush.bf16.xpose.msra.mxu0 0
        %693 = vmatpush.bf16.xpose.msra.mxu0 0
        %694 = vmatpush.bf16.xpose.msra.mxu0 0
        %695 = vmatpush.bf16.xpose.msra.mxu0 %v686
        %696 = vmatmul.bf16.gmra.mxu0 %v683
        %v697 = vpop.f32.mrf.mxu0
        %v698 = vadd.f32 %v430, %v697
        %v699 = vpop.f32.mrf.mxu0
        %v700 = vadd.f32 %v430, %v699
        %701 = vdwg.mxu0
        %v702 = vsel %vm461, %v698, -inf
        %703 = vmax.xlane.f32.xlu0 %v702
        %v704 = vpop.xlane.xlu0 %703
        %v705 = vsel %vm461, %v700, -inf
        %706 = vmax.xlane.f32.xlu0 %v705
        %v707 = vpop.xlane.xlu0 %706
        %v708 = vsub.f32 %v698, %v704
        %v709 = vsub.f32 %v700, %v707
        %v710 = vmul.f32 %v708, 1.442695
        %v711 = vpow.pop %v710
        %v712 = vmul.f32 %v709, 1.442695
        %v713 = vpow.pop %v712
        %v714 = vsel %vm461, %v711, 0.0
        %715 = vadd.xlane.f32.xlu0 %v714
        %v716 = vpop.xlane.xlu0 %715
        %v717 = vsel %vm461, %v713, 0.0
        %718 = vadd.xlane.f32.xlu0 %v717
        %v719 = vpop.xlane.xlu0 %718
        %v720 = vrcp.pop %v716
        %v721 = vrcp.pop %v719
        %v722 = vmul.f32 %v711, %v720
        %v723 = vmul.f32 %v713, %v721
        %v724 = vpack.c.bf16 %v722, %v722
        %v725 = vpack.c.bf16 %v723, %v723
        %v728 = vunpack.c.l.b16 %v724
        %v729 = vunpack.c.l.b16 %v725
        %v730 = vpack.c.b16 %v729, %v728
        %v731 = vunpack.c.l.b16 %v676
        %v732 = vunpack.c.l.b16 %v677
        %v733 = vpack.c.b16 %v732, %v731
        %v736 = vsel %vm461, %v730, 0
        %738 = vmatpush.bf16.msra.mxu0 0
        %739 = vmatpush.bf16.msra.mxu0 0
        %740 = vmatpush.bf16.msra.mxu0 0
        %741 = vmatpush.bf16.msra.mxu0 0
        %742 = vmatpush.bf16.msra.mxu0 0
        %743 = vmatpush.bf16.msra.mxu0 0
        %744 = vmatpush.bf16.msra.mxu0 0
        %745 = vmatpush.bf16.msra.mxu0 %v733
        %746 = vmatmul.bf16.gmra.mxu0 %v736
        %v747 = vpop.f32.mrf.mxu0
        %v748 = vadd.f32 0.0, %v747
        %v749 = vpop.f32.mrf.mxu0
        %v750 = vadd.f32 0.0, %v749
        %751 = vdwg.mxu0
        %752 = vrot.lane.b32.xlu0 %v425, 96
        %v753 = vpop.permute.xlu0 %752
        %754 = vrot.lane.b32.xlu0 %v426, 96
        %v755 = vpop.permute.xlu0 %754
        %v756 = vrot.slane %v753, 4
        %v757 = vrot.slane %v755, 4
        %758 = vrot.lane.b32.xlu0 %v437, 96
        %v759 = vpop.permute.xlu0 %758
        %760 = vrot.lane.b32.xlu0 %v437, 32
        %v761 = vpop.permute.xlu0 %760
        %v763 = vsel %vm440, %v759, 0
        %v766 = vsel %vm440, %v761, 0
        %768 = vmatpush.bf16.xpose.msra.mxu0 0
        %769 = vmatpush.bf16.xpose.msra.mxu0 0
        %770 = vmatpush.bf16.xpose.msra.mxu0 0
        %771 = vmatpush.bf16.xpose.msra.mxu0 0
        %772 = vmatpush.bf16.xpose.msra.mxu0 0
        %773 = vmatpush.bf16.xpose.msra.mxu0 0
        %774 = vmatpush.bf16.xpose.msra.mxu0 0
        %775 = vmatpush.bf16.xpose.msra.mxu0 %v766
        %776 = vmatmul.bf16.gmra.mxu0 %v763
        %v777 = vpop.f32.mrf.mxu0
        %v778 = vadd.f32 %v430, %v777
        %v779 = vpop.f32.mrf.mxu0
        %v780 = vadd.f32 %v430, %v779
        %781 = vdwg.mxu0
        %v782 = vsel %vm461, %v778, -inf
        %783 = vmax.xlane.f32.xlu0 %v782
        %v784 = vpop.xlane.xlu0 %783
        %v785 = vsel %vm461, %v780, -inf
        %786 = vmax.xlane.f32.xlu0 %v785
        %v787 = vpop.xlane.xlu0 %786
        %v788 = vsub.f32 %v778, %v784
        %v789 = vsub.f32 %v780, %v787
        %v790 = vmul.f32 %v788, 1.442695
        %v791 = vpow.pop %v790
        %v792 = vmul.f32 %v789, 1.442695
        %v793 = vpow.pop %v792
        %v794 = vsel %vm461, %v791, 0.0
        %795 = vadd.xlane.f32.xlu0 %v794
        %v796 = vpop.xlane.xlu0 %795
        %v797 = vsel %vm461, %v793, 0.0
        %798 = vadd.xlane.f32.xlu0 %v797
        %v799 = vpop.xlane.xlu0 %798
        %v800 = vrcp.pop %v796
        %v801 = vrcp.pop %v799
        %v802 = vmul.f32 %v791, %v800
        %v803 = vmul.f32 %v793, %v801
        %v804 = vpack.c.bf16 %v802, %v802
        %v805 = vpack.c.bf16 %v803, %v803
        %v808 = vunpack.c.l.b16 %v804
        %v809 = vunpack.c.l.b16 %v805
        %v810 = vpack.c.b16 %v809, %v808
        %v811 = vunpack.c.l.b16 %v756
        %v812 = vunpack.c.l.b16 %v757
        %v813 = vpack.c.b16 %v812, %v811
        %v816 = vsel %vm461, %v810, 0
        %818 = vmatpush.bf16.msra.mxu0 0
        %819 = vmatpush.bf16.msra.mxu0 0
        %820 = vmatpush.bf16.msra.mxu0 0
        %821 = vmatpush.bf16.msra.mxu0 0
        %822 = vmatpush.bf16.msra.mxu0 0
        %823 = vmatpush.bf16.msra.mxu0 0
        %824 = vmatpush.bf16.msra.mxu0 0
        %825 = vmatpush.bf16.msra.mxu0 %v813
        %826 = vmatmul.bf16.gmra.mxu0 %v816
        %v827 = vpop.f32.mrf.mxu0
        %v828 = vadd.f32 0.0, %v827
        %v829 = vpop.f32.mrf.mxu0
        %v830 = vadd.f32 0.0, %v829
        %831 = vdwg.mxu0
        %832 = vrot.lane.b32.xlu0 %v425, 88
        %v833 = vpop.permute.xlu0 %832
        %834 = vrot.lane.b32.xlu0 %v426, 88
        %v835 = vpop.permute.xlu0 %834
        %v836 = vrot.slane %v833, 4
        %v837 = vrot.slane %v835, 4
        %838 = vrot.lane.b32.xlu0 %v437, 88
        %v839 = vpop.permute.xlu0 %838
        %840 = vrot.lane.b32.xlu0 %v437, 24
        %v841 = vpop.permute.xlu0 %840
        %v843 = vsel %vm440, %v839, 0
        %v846 = vsel %vm440, %v841, 0
        %848 = vmatpush.bf16.xpose.msra.mxu0 0
        %849 = vmatpush.bf16.xpose.msra.mxu0 0
        %850 = vmatpush.bf16.xpose.msra.mxu0 0
        %851 = vmatpush.bf16.xpose.msra.mxu0 0
        %852 = vmatpush.bf16.xpose.msra.mxu0 0
        %853 = vmatpush.bf16.xpose.msra.mxu0 0
        %854 = vmatpush.bf16.xpose.msra.mxu0 0
        %855 = vmatpush.bf16.xpose.msra.mxu0 %v846
        %856 = vmatmul.bf16.gmra.mxu0 %v843
        %v857 = vpop.f32.mrf.mxu0
        %v858 = vadd.f32 %v430, %v857
        %v859 = vpop.f32.mrf.mxu0
        %v860 = vadd.f32 %v430, %v859
        %861 = vdwg.mxu0
        %v862 = vsel %vm461, %v858, -inf
        %863 = vmax.xlane.f32.xlu0 %v862
        %v864 = vpop.xlane.xlu0 %863
        %v865 = vsel %vm461, %v860, -inf
        %866 = vmax.xlane.f32.xlu0 %v865
        %v867 = vpop.xlane.xlu0 %866
        %v868 = vsub.f32 %v858, %v864
        %v869 = vsub.f32 %v860, %v867
        %v870 = vmul.f32 %v868, 1.442695
        %v871 = vpow.pop %v870
        %v872 = vmul.f32 %v869, 1.442695
        %v873 = vpow.pop %v872
        %v874 = vsel %vm461, %v871, 0.0
        %875 = vadd.xlane.f32.xlu0 %v874
        %v876 = vpop.xlane.xlu0 %875
        %v877 = vsel %vm461, %v873, 0.0
        %878 = vadd.xlane.f32.xlu0 %v877
        %v879 = vpop.xlane.xlu0 %878
        %v880 = vrcp.pop %v876
        %v881 = vrcp.pop %v879
        %v882 = vmul.f32 %v871, %v880
        %v883 = vmul.f32 %v873, %v881
        %v884 = vpack.c.bf16 %v882, %v882
        %v885 = vpack.c.bf16 %v883, %v883
        %v888 = vunpack.c.l.b16 %v884
        %v889 = vunpack.c.l.b16 %v885
        %v890 = vpack.c.b16 %v889, %v888
        %v891 = vunpack.c.l.b16 %v836
        %v892 = vunpack.c.l.b16 %v837
        %v893 = vpack.c.b16 %v892, %v891
        %v896 = vsel %vm461, %v890, 0
        %898 = vmatpush.bf16.msra.mxu0 0
        %899 = vmatpush.bf16.msra.mxu0 0
        %900 = vmatpush.bf16.msra.mxu0 0
        %901 = vmatpush.bf16.msra.mxu0 0
        %902 = vmatpush.bf16.msra.mxu0 0
        %903 = vmatpush.bf16.msra.mxu0 0
        %904 = vmatpush.bf16.msra.mxu0 0
        %905 = vmatpush.bf16.msra.mxu0 %v893
        %906 = vmatmul.bf16.gmra.mxu0 %v896
        %v907 = vpop.f32.mrf.mxu0
        %v908 = vadd.f32 0.0, %v907
        %v909 = vpop.f32.mrf.mxu0
        %v910 = vadd.f32 0.0, %v909
        %911 = vdwg.mxu0
        %912 = vrot.lane.b32.xlu0 %v425, 80
        %v913 = vpop.permute.xlu0 %912
        %914 = vrot.lane.b32.xlu0 %v426, 80
        %v915 = vpop.permute.xlu0 %914
        %v916 = vrot.slane %v913, 4
        %v917 = vrot.slane %v915, 4
        %918 = vrot.lane.b32.xlu0 %v437, 80
        %v919 = vpop.permute.xlu0 %918
        %920 = vrot.lane.b32.xlu0 %v437, 16
        %v921 = vpop.permute.xlu0 %920
        %v923 = vsel %vm440, %v919, 0
        %v926 = vsel %vm440, %v921, 0
        %928 = vmatpush.bf16.xpose.msra.mxu0 0
        %929 = vmatpush.bf16.xpose.msra.mxu0 0
        %930 = vmatpush.bf16.xpose.msra.mxu0 0
        %931 = vmatpush.bf16.xpose.msra.mxu0 0
        %932 = vmatpush.bf16.xpose.msra.mxu0 0
        %933 = vmatpush.bf16.xpose.msra.mxu0 0
        %934 = vmatpush.bf16.xpose.msra.mxu0 0
        %935 = vmatpush.bf16.xpose.msra.mxu0 %v926
        %936 = vmatmul.bf16.gmra.mxu0 %v923
        %v937 = vpop.f32.mrf.mxu0
        %v938 = vadd.f32 %v430, %v937
        %v939 = vpop.f32.mrf.mxu0
        %v940 = vadd.f32 %v430, %v939
        %941 = vdwg.mxu0
        %v942 = vsel %vm461, %v938, -inf
        %943 = vmax.xlane.f32.xlu0 %v942
        %v944 = vpop.xlane.xlu0 %943
        %v945 = vsel %vm461, %v940, -inf
        %946 = vmax.xlane.f32.xlu0 %v945
        %v947 = vpop.xlane.xlu0 %946
        %v948 = vsub.f32 %v938, %v944
        %v949 = vsub.f32 %v940, %v947
        %v950 = vmul.f32 %v948, 1.442695
        %v951 = vpow.pop %v950
        %v952 = vmul.f32 %v949, 1.442695
        %v953 = vpow.pop %v952
        %v954 = vsel %vm461, %v951, 0.0
        %955 = vadd.xlane.f32.xlu0 %v954
        %v956 = vpop.xlane.xlu0 %955
        %v957 = vsel %vm461, %v953, 0.0
        %958 = vadd.xlane.f32.xlu0 %v957
        %v959 = vpop.xlane.xlu0 %958
        %v960 = vrcp.pop %v956
        %v961 = vrcp.pop %v959
        %v962 = vmul.f32 %v951, %v960
        %v963 = vmul.f32 %v953, %v961
        %v964 = vpack.c.bf16 %v962, %v962
        %v965 = vpack.c.bf16 %v963, %v963
        %v968 = vunpack.c.l.b16 %v964
        %v969 = vunpack.c.l.b16 %v965
        %v970 = vpack.c.b16 %v969, %v968
        %v971 = vunpack.c.l.b16 %v916
        %v972 = vunpack.c.l.b16 %v917
        %v973 = vpack.c.b16 %v972, %v971
        %v976 = vsel %vm461, %v970, 0
        %978 = vmatpush.bf16.msra.mxu0 0
        %979 = vmatpush.bf16.msra.mxu0 0
        %980 = vmatpush.bf16.msra.mxu0 0
        %981 = vmatpush.bf16.msra.mxu0 0
        %982 = vmatpush.bf16.msra.mxu0 0
        %983 = vmatpush.bf16.msra.mxu0 0
        %984 = vmatpush.bf16.msra.mxu0 0
        %985 = vmatpush.bf16.msra.mxu0 %v973
        %986 = vmatmul.bf16.gmra.mxu0 %v976
        %v987 = vpop.f32.mrf.mxu0
        %v988 = vadd.f32 0.0, %v987
        %v989 = vpop.f32.mrf.mxu0
        %v990 = vadd.f32 0.0, %v989
        %991 = vdwg.mxu0
        %992 = vrot.lane.b32.xlu0 %v425, 72
        %v993 = vpop.permute.xlu0 %992
        %994 = vrot.lane.b32.xlu0 %v426, 72
        %v995 = vpop.permute.xlu0 %994
        %v996 = vrot.slane %v993, 4
        %v997 = vrot.slane %v995, 4
        %998 = vrot.lane.b32.xlu0 %v437, 72
        %v999 = vpop.permute.xlu0 %998
        %1000 = vrot.lane.b32.xlu0 %v437, 8
        %v1001 = vpop.permute.xlu0 %1000
        %v1003 = vsel %vm440, %v999, 0
        %v1006 = vsel %vm440, %v1001, 0
        %1008 = vmatpush.bf16.xpose.msra.mxu0 0
        %1009 = vmatpush.bf16.xpose.msra.mxu0 0
        %1010 = vmatpush.bf16.xpose.msra.mxu0 0
        %1011 = vmatpush.bf16.xpose.msra.mxu0 0
        %1012 = vmatpush.bf16.xpose.msra.mxu0 0
        %1013 = vmatpush.bf16.xpose.msra.mxu0 0
        %1014 = vmatpush.bf16.xpose.msra.mxu0 0
        %1015 = vmatpush.bf16.xpose.msra.mxu0 %v1006
        %1016 = vmatmul.bf16.gmra.mxu0 %v1003
        %v1017 = vpop.f32.mrf.mxu0
        %v1018 = vadd.f32 %v430, %v1017
        %v1019 = vpop.f32.mrf.mxu0
        %v1020 = vadd.f32 %v430, %v1019
        %1021 = vdwg.mxu0
        %v1022 = vsel %vm461, %v1018, -inf
        %1023 = vmax.xlane.f32.xlu0 %v1022
        %v1024 = vpop.xlane.xlu0 %1023
        %v1025 = vsel %vm461, %v1020, -inf
        %1026 = vmax.xlane.f32.xlu0 %v1025
        %v1027 = vpop.xlane.xlu0 %1026
        %v1028 = vsub.f32 %v1018, %v1024
        %v1029 = vsub.f32 %v1020, %v1027
        %v1030 = vmul.f32 %v1028, 1.442695
        %v1031 = vpow.pop %v1030
        %v1032 = vmul.f32 %v1029, 1.442695
        %v1033 = vpow.pop %v1032
        %v1034 = vsel %vm461, %v1031, 0.0
        %1035 = vadd.xlane.f32.xlu0 %v1034
        %v1036 = vpop.xlane.xlu0 %1035
        %v1037 = vsel %vm461, %v1033, 0.0
        %1038 = vadd.xlane.f32.xlu0 %v1037
        %v1039 = vpop.xlane.xlu0 %1038
        %v1040 = vrcp.pop %v1036
        %v1041 = vrcp.pop %v1039
        %v1042 = vmul.f32 %v1031, %v1040
        %v1043 = vmul.f32 %v1033, %v1041
        %v1044 = vpack.c.bf16 %v1042, %v1042
        %v1045 = vpack.c.bf16 %v1043, %v1043
        %v1048 = vunpack.c.l.b16 %v1044
        %v1049 = vunpack.c.l.b16 %v1045
        %v1050 = vpack.c.b16 %v1049, %v1048
        %v1051 = vunpack.c.l.b16 %v996
        %v1052 = vunpack.c.l.b16 %v997
        %v1053 = vpack.c.b16 %v1052, %v1051
        %v1056 = vsel %vm461, %v1050, 0
        %1058 = vmatpush.bf16.msra.mxu0 0
        %1059 = vmatpush.bf16.msra.mxu0 0
        %1060 = vmatpush.bf16.msra.mxu0 0
        %1061 = vmatpush.bf16.msra.mxu0 0
        %1062 = vmatpush.bf16.msra.mxu0 0
        %1063 = vmatpush.bf16.msra.mxu0 0
        %1064 = vmatpush.bf16.msra.mxu0 0
        %1065 = vmatpush.bf16.msra.mxu0 %v1053
        %1066 = vmatmul.bf16.gmra.mxu0 %v1056
        %v1067 = vpop.f32.mrf.mxu0
        %v1068 = vadd.f32 0.0, %v1067
        %v1069 = vpop.f32.mrf.mxu0
        %v1070 = vadd.f32 0.0, %v1069
        %1071 = vdwg.mxu0
        %1074 = vrot.lane.b32.xlu0 %v588, 8
        %v1075 = vpop.permute.xlu0 %1074
        %1076 = vrot.lane.b32.xlu0 %v590, 8
        %v1077 = vpop.permute.xlu0 %1076
        %1082 = vrot.lane.b32.xlu0 %v668, 16
        %v1083 = vpop.permute.xlu0 %1082
        %1084 = vrot.lane.b32.xlu0 %v670, 16
        %v1085 = vpop.permute.xlu0 %1084
        %1090 = vrot.lane.b32.xlu0 %v748, 24
        %v1091 = vpop.permute.xlu0 %1090
        %1092 = vrot.lane.b32.xlu0 %v750, 24
        %v1093 = vpop.permute.xlu0 %1092
        %1098 = vrot.lane.b32.xlu0 %v828, 32
        %v1099 = vpop.permute.xlu0 %1098
        %1100 = vrot.lane.b32.xlu0 %v830, 32
        %v1101 = vpop.permute.xlu0 %1100
        %1106 = vrot.lane.b32.xlu0 %v908, 40
        %v1107 = vpop.permute.xlu0 %1106
        %1108 = vrot.lane.b32.xlu0 %v910, 40
        %v1109 = vpop.permute.xlu0 %1108
        %1114 = vrot.lane.b32.xlu0 %v988, 48
        %v1115 = vpop.permute.xlu0 %1114
        %1116 = vrot.lane.b32.xlu0 %v990, 48
        %v1117 = vpop.permute.xlu0 %1116
        %1122 = vrot.lane.b32.xlu0 %v1068, 56
        %v1123 = vpop.permute.xlu0 %1122
        %1124 = vrot.lane.b32.xlu0 %v1070, 56
        %v1125 = vpop.permute.xlu0 %1124
        %v1128 = vsel %vm440, %v508, %v1075
        %v1129 = vsel %vm440, %v510, %v1077
        %v1130 = vsel %vm461, %v1128, %v1083
        %v1131 = vsel %vm461, %v1129, %v1085
        %vm1132 = vcmask 195584
        %v1133 = vsel %vm1132, %v1130, %v1091
        %v1134 = vsel %vm1132, %v1131, %v1093
        %vm1135 = vcmask 261120
        %v1136 = vsel %vm1135, %v1133, %v1099
        %v1137 = vsel %vm1135, %v1134, %v1101
        %vm1138 = vcmask 326656
        %v1139 = vsel %vm1138, %v1136, %v1107
        %v1140 = vsel %vm1138, %v1137, %v1109
        %vm1141 = vcmask 392192
        %v1142 = vsel %vm1141, %v1139, %v1115
        %v1143 = vsel %vm1141, %v1140, %v1117
        %vm1144 = vcmask 457728
        %v1145 = vsel %vm1144, %v1142, %v1123
        %v1146 = vsel %vm1144, %v1143, %v1125
        %v1147 = vpack.c.bf16 %v1146, %v1145
        %v1148 = vld [vmem:[#allocation3] sm:$0xff]
        %v1149 = vld [vmem:[#allocation3 + $0x8] sm:$0xff]
        %s1150 = smul.u32 %s27, 8
        %s1151 = smul.addr %s1150, 4
        %s1152 = scalar_lea.vmem [#allocation7], %s1151
        %v1153 = vld [vmem:[%s1152] sm:$0xf]
        %v1154 = vld [vmem:[%s1152 + $0x4] sm:$0xf]
        %v1155 = vld [vmem:[%s1152 + $0x8] sm:$0xf]
        %v1156 = vld [vmem:[%s1152 + $0xc] sm:$0xf]
        %v1157 = vld [vmem:[%s1152 + $0x10] sm:$0xf]
        %v1158 = vld [vmem:[%s1152 + $0x14] sm:$0xf]
        %v1159 = vld [vmem:[%s1152 + $0x18] sm:$0xf]
        %v1160 = vld [vmem:[%s1152 + $0x1c] sm:$0xf]
        %v1169 = vunpack.c.l.b16 %v1153
        %v1170 = vunpack.c.l.b16 %v1154
        %v1171 = vunpack.c.l.b16 %v1155
        %v1172 = vunpack.c.l.b16 %v1156
        %v1173 = vunpack.c.l.b16 %v1157
        %v1174 = vunpack.c.l.b16 %v1158
        %v1175 = vunpack.c.l.b16 %v1159
        %v1176 = vunpack.c.l.b16 %v1160
        %v1177 = vpack.c.b16 %v1170, %v1169
        %v1178 = vpack.c.b16 %v1172, %v1171
        %v1179 = vpack.c.b16 %v1174, %v1173
        %v1180 = vpack.c.b16 %v1176, %v1175
        %v1186 = vsel %vm393, %v1147, 0
        %1188 = vmatpush.bf16.msra.mxu0 0
        %1189 = vmatpush.bf16.msra.mxu0 0
        %1190 = vmatpush.bf16.msra.mxu0 0
        %1191 = vmatpush.bf16.msra.mxu0 0
        %1192 = vmatpush.bf16.msra.mxu0 %v1180
        %1193 = vmatpush.bf16.msra.mxu0 %v1179
        %1194 = vmatpush.bf16.msra.mxu0 %v1178
        %1195 = vmatpush.bf16.msra.mxu0 %v1177
        %1196 = vmatmul.bf16.gmra.mxu0 %v1186
        %v1197 = vpop.f32.mrf.mxu0
        %v1198 = vadd.f32 0.0, %v1197
        %v1199 = vpop.f32.mrf.mxu0
        %v1200 = vadd.f32 0.0, %v1199
        %1201 = vdwg.mxu0
        %v1202 = vadd.f32 %v1148, %v1198
        %v1203 = vadd.f32 %v1149, %v1200
        %1204 = vst.msk [vmem:[#allocation3] sm:$0xff] %vm393, %v1202
        %1205 = vst.msk [vmem:[#allocation3 + $0x8] sm:$0xff] %vm393, %v1203
        // Predicated region
        $region57: #{tpu_custom_call.1} parent=43 // pred_check
          %p1206 = pneg %p297
        $region58: #{tpu_custom_call.1} parent=43 // pred_check_branch
          %1208 = sbr.rel (%p1206) target = $region60
        $region59: #{tpu_custom_call.1} parent=43 // pred_region
          %v1209 = vld [vmem:[#allocation3] sm:$0xff]
          %v1210 = vld [vmem:[#allocation3 + $0x8] sm:$0xff]
          %v1211 = vld [vmem:[%s5] sm:$0x1]
          %v1213 = vperm.slane %v1211, 0
          %v1215 = vadd.f32 %v1209, %v1213
          %v1216 = vadd.f32 %v1210, %v1213
          %1217 = vst.msk [vmem:[%s290] sm:$0xff] %vm393, %v1215
          %1218 = vst.msk [vmem:[%s290 + $0x8] sm:$0xff] %vm393, %v1216
        $region60: #{tpu_custom_call.1} parent=43 // pred_fallthru
          _
        %s1219 = sand.u32 %s173, 1
        %s1220 = scalar_lea.sflag [#allocation6], %s1219
        %s1221 = sand.u32 %s173, 1
        %s1222 = smul.addr %s1221, 16
        %s1223 = scalar_lea.vmem [#allocation9], %s1222
        // Predicated region
        $region61: #{tpu_custom_call.1} parent=43 // pred_check
          %p1224 = pneg %p183
        $region62: #{tpu_custom_call.1} parent=43 // pred_check_branch
          %1226 = sbr.rel (%p1224) target = $region64
        $region63: #{tpu_custom_call.1} parent=43 // pred_region
          %1228 = vsyncadd %s1220, 0
          %s1229 = smul.addr %s26, 2
          %s1230 = smul.addr %s1229, 8
          %s1231 = scalar_lea.hbm %s6, %s1230
          %s1232 = sshll.u32 %s1223, 4
          %s1233 = int_to_ptr.vmem [resolvable:$true] %s1232
          %s1234 = sshll.u32 %s1231, 4
          %s1235 = int_to_ptr.hbm [resolvable:$true] %s1234
          %1240 = dma.vmem_to_hbm [thread:$0]  %s1233, 256, %s1235, %s1220, 128, 128, 8
        $region64: #{tpu_custom_call.1} parent=43 // pred_fallthru
          _
      $region44: #{tpu_custom_call.1} parent=5 // pred_fallthru
        _
      %p1241 = scmp.le.s32.totalorder 2, %s17
      // Predicated region
      $region65: #{tpu_custom_call.1} parent=5 // pred_check
        %p1242 = pneg %p1241
      $region66: #{tpu_custom_call.1} parent=5 // pred_check_branch
        %1244 = sbr.rel (%p1242) target = $region68
      $region67: #{tpu_custom_call.1} parent=5 // pred_region
        %s1245 = ssub.s32 %s17, 2
        // Predicated region
        $region69: #{tpu_custom_call.1} parent=67 // pred_check
          %p1246 = pneg %p189
        $region70: #{tpu_custom_call.1} parent=67 // pred_check_branch
          %1248 = sbr.rel (%p1246) target = $region72
        $region71: #{tpu_custom_call.1} parent=67 // pred_region
          %s1249 = sand.u32 %s174, 1
          %s1250 = scalar_lea.sflag [#allocation6], %s1249
          %s1251 = sand.u32 %s174, 1
          %s1252 = smul.addr %s1251, 16
          %s1253 = scalar_lea.vmem [#allocation9], %s1252
          %1255 = dma.done %s1250, 256
        $region72: #{tpu_custom_call.1} parent=67 // pred_fallthru
          _
      $region68: #{tpu_custom_call.1} parent=5 // pred_fallthru
        _
    $region6: #{tpu_custom_call.1} parent=1 // loop_footer
      %s21 = sadd.s32 1, %s17
    $region7: #{tpu_custom_call.1} parent=1 // loop_footer_branch
      %16 = sbr.rel target = $region3
    $region8: #{tpu_custom_call.1} parent=1 // loop_exit
      _
    %1256 = vsyncpa [#allocation5], 1
    %s1257 = scalar_lea.sflag [#allocation5], 1
    %1258 = vsyncpa %s1257, 1
    %1259 = vsyncpa [#allocation8], 1
    %1260 = vsyncpa [#allocation6], 1
    %s1261 = scalar_lea.sflag [#allocation6], 1
    %1262 = vsyncpa %s1261, 1

</llo_original>
